<compile_context>
chip_gen: v6e
topology: v6e:2x2x1
jax: 0.10.0
libtpu: 0.0.40
codegen_flags: <defaults>
</compile_context>

<pallas_src>
import functools

import jax
import jax.numpy as jnp
from jax import lax
from jax.experimental import pallas as pl
from jax.experimental.pallas import tpu as pltpu


def _round_up(x, m):
    return (x + m - 1) // m * m


def _fused_embed_kernel(uid_ref, hist_ref, act_ref, table_ref, out_ref, *,
                        hist_len, v_user, v_movie, v_action):
    tb = out_ref.shape[0]
    v_total = table_ref.shape[0]
    fdt = table_ref.dtype

    uid = uid_ref[...]          # (tb, 1) int32
    hist = hist_ref[...]        # (tb, H) int32
    act = act_ref[...]          # (tb, 1) int32

    # Single hoisted iota over the combined vocabulary (reused for all slots).
    iota = lax.broadcasted_iota(jnp.int32, (tb, v_total), 1)

    def slot_onehot(ids_col, lo_off, size):
        # In-kernel clamp (matches jnp.take's default "clip" mode), then offset
        # into this slot's disjoint segment of the block-diagonal table.
        ids = jnp.clip(ids_col, 0, size - 1) + lo_off
        return (iota == ids).astype(fdt)

    # Multi-hot selector: exactly one 1.0 per (row, slot); slots hit disjoint
    # vocab segments, so the matmul below emits the full concatenated row.
    sel = slot_onehot(uid, 0, v_user)
    for hh in range(hist_len):                       # static, small H
        sel += slot_onehot(hist[:, hh:hh + 1], v_user + hh * v_movie, v_movie)
    sel += slot_onehot(act, v_user + hist_len * v_movie, v_action)

    # One well-shaped MXU matmul (K = V_total, N = (H+2)*D) and one lane-dense
    # store of the whole output slab.  HIGHEST precision keeps f32 gathers
    # bit-exact (each output element is exactly 1.0 * table value + zeros).
    out_ref[...] = jnp.dot(
        sel, table_ref[...],
        preferred_element_type=jnp.float32,
        precision=lax.Precision.HIGHEST,
    ).astype(out_ref.dtype)


def _build_combined_table(params, hist_len):
    """Block-diagonal table: rows = [user | H x movie | action] vocab segments,
    cols = [user D | H x movie D | action D] output slots.  In a real model
    this should be cached per parameter update, not rebuilt per forward."""
    utab, mtab, atab = params["user"], params["movie"], params["action"]
    v_u, d = utab.shape
    v_m = mtab.shape[0]
    v_a = atab.shape[0]
    v_total = v_u + hist_len * v_m + v_a
    out_cols = (hist_len + 2) * d

    tab = jnp.zeros((v_total, out_cols), utab.dtype)
    tab = tab.at[:v_u, :d].set(utab)
    for hh in range(hist_len):
        r0 = v_u + hh * v_m
        tab = tab.at[r0:r0 + v_m, (1 + hh) * d:(2 + hh) * d].set(mtab)
    tab = tab.at[v_u + hist_len * v_m:, (1 + hist_len) * d:].set(atab)
    return tab


def _vmem_capacity_bytes():
    try:
        info = pltpu.get_tpu_info()
        cap = getattr(info, "vmem_capacity_bytes", None)
        if cap:
            return int(cap)
    except Exception:
        pass
    return 64 * 1024 * 1024  # conservative: v7x per-TC VMEM


def embedding_forward(params, user_ids, movie_history, actions,
                      combined_table=None):
    utab, mtab, atab = params["user"], params["movie"], params["action"]
    b = user_ids.shape[0]
    h = movie_history.shape[1]
    d = utab.shape[1]
    v_u, v_m, v_a = utab.shape[0], mtab.shape[0], atab.shape[0]
    out_cols = (h + 2) * d

    if combined_table is None:
        combined_table = _build_combined_table(params, h)
    v_total = combined_table.shape[0]
    fdt = combined_table.dtype

    uid = user_ids.reshape(b, 1).astype(jnp.int32)
    hid = movie_history.astype(jnp.int32)
    aid = actions.reshape(b, 1).astype(jnp.int32)

    # Batch tiling: multiples of 8 sublanes, up to 512 rows, and >=2 grid steps
    # when possible so the "parallel" axis can shard across both v7x TCs.
    if b <= 8:
        tile_b = 8
    else:
        tile_b = min(512, _round_up(-(-b // 2), 8))
    bp = _round_up(b, tile_b)
    if bp != b:
        pad = bp - b
        uid = jnp.pad(uid, ((0, pad), (0, 0)))
        hid = jnp.pad(hid, ((0, pad), (0, 0)))
        aid = jnp.pad(aid, ((0, pad), (0, 0)))

    # VMEM budgeting (generation-aware).  Includes the 2x pipeline buffers of
    # the resident combined table, padded id/out tiles, and the live
    # iota / one-hot intermediates.
    cap = _vmem_capacity_bytes()
    vmem_budget = int(0.80 * cap)
    lane = 128
    v_pad = _round_up(v_total, lane)
    cols_pad = _round_up(out_cols, lane)
    table_bytes = 2 * v_total * cols_pad * fdt.itemsize        # double-buffered table
    id_bytes = 2 * 3 * tile_b * lane * 4                       # padded id tiles x2 buffers
    out_bytes = 2 * tile_b * cols_pad * fdt.itemsize           # output tile x2 buffers
    live_bytes = 3 * tile_b * v_pad * 4                        # iota + one-hot + cmp temp
    need = table_bytes + id_bytes + out_bytes + live_bytes + (1 << 20)
    if need > vmem_budget:
        # TODO(synk): add a vocab-tiled / manual-DMA gather fallback for tables
        # (or one-hot intermediates) too large for VMEM residency.
        raise NotImplementedError(
            "embedding tables too large for the VMEM-resident fused path")
    # TODO(synk): single-buffer the constant table (pipeline_mode=pl.Buffered(1))
    # once buffer_count=1 is guaranteed supported; the budget above assumes 2x.

    kernel = functools.partial(
        _fused_embed_kernel,
        hist_len=h, v_user=v_u, v_movie=v_m, v_action=v_a)

    out = pl.pallas_call(
        kernel,
        out_shape=jax.ShapeDtypeStruct((bp, out_cols), fdt),
        grid=(bp // tile_b,),
        in_specs=[
            pl.BlockSpec((tile_b, 1), lambda i: (i, 0)),            # user ids
            pl.BlockSpec((tile_b, h), lambda i: (i, 0)),            # movie history ids
            pl.BlockSpec((tile_b, 1), lambda i: (i, 0)),            # action ids
            pl.BlockSpec(combined_table.shape, lambda i: (0, 0)),   # resident combined table
        ],
        out_specs=pl.BlockSpec((tile_b, out_cols), lambda i: (i, 0)),
        compiler_params=pltpu.CompilerParams(
            dimension_semantics=("parallel",),   # disjoint output tiles -> 2 TCs on v7x
            vmem_limit_bytes=int(max(vmem_budget, 32 * 1024 * 1024)),
        ),
    )(uid, hid, aid, combined_table)
    return out[:b]


def init_params(key, num_users, num_movies, embed_dim, dtype=jnp.float32):
    ku, km, ka = jax.random.split(key, 3)
    return {
        "user": jax.random.normal(ku, (1 + num_users, embed_dim), dtype),
        "movie": jax.random.normal(km, (1 + num_movies, embed_dim), dtype),
        "action": jax.random.normal(ka, (1 + num_movies, embed_dim), dtype),
    }


def embedding_forward_ref(params, user_ids, movie_history, actions):
    b = user_ids.shape[0]
    h = movie_history.shape[1]
    d = params["user"].shape[1]
    u = jnp.take(params["user"], user_ids.reshape(-1), axis=0)
    m = jnp.take(params["movie"], movie_history.reshape(-1), axis=0).reshape(b, h * d)
    a = jnp.take(params["action"], actions.reshape(-1), axis=0)
    return jnp.concatenate([u, m, a], axis=-1)


if __name__ == "__main__":
    num_users, num_movies, embed_dim = 10, 20, 32
    batch, hist_len = 2, 8

    key = jax.random.PRNGKey(0)
    kp, k1, k2, k3 = jax.random.split(key, 4)

    params = init_params(kp, num_users, num_movies, embed_dim)

    user_ids = jax.random.randint(k1, (batch, 1), 0, 1 + num_users, jnp.int32)
    movie_history = jax.random.randint(
        k2, (batch, hist_len), 0, 1 + num_movies, jnp.int32
    )
    actions = jax.random.randint(k3, (batch, 1), 0, 1 + num_movies, jnp.int32)

    out = embedding_forward(params, user_ids, movie_history, actions)
    out = jax.block_until_ready(out)

    ref = embedding_forward_ref(params, user_ids, movie_history, actions)
    assert out.shape == (batch, embed_dim * (hist_len + 2)), out.shape
    assert jnp.allclose(out, ref, rtol=1e-6, atol=1e-6), "mismatch vs reference gather"

    print("KERNEL_OK")
</pallas_src>

<mosaic_0001>
module attributes {stable_mosaic.version = 11 : i64} {
  func.func @_fused_embed_kernel(%arg0: i32, %arg1: memref<8x1xi32, #tpu.memory_space<vmem>>, %arg2: memref<8x8xi32, #tpu.memory_space<vmem>>, %arg3: memref<8x1xi32, #tpu.memory_space<vmem>>, %arg4: memref<200x320xf32, #tpu.memory_space<vmem>>, %arg5: memref<8x320xf32, #tpu.memory_space<vmem>>) attributes {dimension_semantics = [#tpu.dimension_semantics<parallel>], iteration_bounds = array<i64: 1>, scalar_prefetch = 0 : i64, scratch_operands = 0 : i64, tpu.core_type = #tpu.core_type<tc>, window_params = [{transform_indices = @transform_0, window_bounds = array<i64: 8, 1>}, {transform_indices = @transform_1, window_bounds = array<i64: 8, 8>}, {transform_indices = @transform_2, window_bounds = array<i64: 8, 1>}, {pipeline_mode = #tpu.pipeline_mode<synchronous>, transform_indices = @transform_3, window_bounds = array<i64: 200, 320>}, {transform_indices = @transform_4, window_bounds = array<i64: 8, 320>}]} {
    %c0 = arith.constant 0 : index
    %c0_0 = arith.constant 0 : index
    %0 = vector.load %arg1[%c0, %c0_0] : memref<8x1xi32, #tpu.memory_space<vmem>>, vector<8x1xi32>
    %c0_1 = arith.constant 0 : index
    %c0_2 = arith.constant 0 : index
    %1 = vector.load %arg2[%c0_1, %c0_2] : memref<8x8xi32, #tpu.memory_space<vmem>>, vector<8x8xi32>
    %c0_3 = arith.constant 0 : index
    %c0_4 = arith.constant 0 : index
    %2 = vector.load %arg3[%c0_3, %c0_4] : memref<8x1xi32, #tpu.memory_space<vmem>>, vector<8x1xi32>
    %3 = tpu.iota {dimensions = array<i32: 1>} : vector<8x200xi32>
    %c0_i32 = arith.constant 0 : i32
    %c10_i32 = arith.constant 10 : i32
    %4 = vector.broadcast %c0_i32 : i32 to vector<8x1xi32>
    %5 = arith.maxsi %4, %0 : vector<8x1xi32>
    %6 = vector.broadcast %c10_i32 : i32 to vector<8x1xi32>
    %7 = arith.minsi %6, %5 : vector<8x1xi32>
    %c0_i32_5 = arith.constant 0 : i32
    %8 = vector.broadcast %c0_i32_5 : i32 to vector<8x1xi32>
    %9 = arith.addi %7, %8 : vector<8x1xi32>
    %10 = vector.broadcast %9 : vector<8x1xi32> to vector<8x200xi32>
    %11 = arith.cmpi eq, %3, %10 : vector<8x200xi32>
    %12 = arith.extui %11 : vector<8x200xi1> to vector<8x200xi32>
    %13 = arith.sitofp %12 : vector<8x200xi32> to vector<8x200xf32>
    %14 = vector.extract_strided_slice %1 {offsets = [0, 0], sizes = [8, 1], strides = [1, 1]} : vector<8x8xi32> to vector<8x1xi32>
    %c0_i32_6 = arith.constant 0 : i32
    %c20_i32 = arith.constant 20 : i32
    %15 = vector.broadcast %c0_i32_6 : i32 to vector<8x1xi32>
    %16 = arith.maxsi %15, %14 : vector<8x1xi32>
    %17 = vector.broadcast %c20_i32 : i32 to vector<8x1xi32>
    %18 = arith.minsi %17, %16 : vector<8x1xi32>
    %c11_i32 = arith.constant 11 : i32
    %19 = vector.broadcast %c11_i32 : i32 to vector<8x1xi32>
    %20 = arith.addi %18, %19 : vector<8x1xi32>
    %21 = vector.broadcast %20 : vector<8x1xi32> to vector<8x200xi32>
    %22 = arith.cmpi eq, %3, %21 : vector<8x200xi32>
    %23 = arith.extui %22 : vector<8x200xi1> to vector<8x200xi32>
    %24 = arith.sitofp %23 : vector<8x200xi32> to vector<8x200xf32>
    %25 = arith.addf %13, %24 : vector<8x200xf32>
    %26 = vector.extract_strided_slice %1 {offsets = [0, 1], sizes = [8, 1], strides = [1, 1]} : vector<8x8xi32> to vector<8x1xi32>
    %c0_i32_7 = arith.constant 0 : i32
    %c20_i32_8 = arith.constant 20 : i32
    %27 = vector.broadcast %c0_i32_7 : i32 to vector<8x1xi32>
    %28 = arith.maxsi %27, %26 : vector<8x1xi32>
    %29 = vector.broadcast %c20_i32_8 : i32 to vector<8x1xi32>
    %30 = arith.minsi %29, %28 : vector<8x1xi32>
    %c32_i32 = arith.constant 32 : i32
    %31 = vector.broadcast %c32_i32 : i32 to vector<8x1xi32>
    %32 = arith.addi %30, %31 : vector<8x1xi32>
    %33 = vector.broadcast %32 : vector<8x1xi32> to vector<8x200xi32>
    %34 = arith.cmpi eq, %3, %33 : vector<8x200xi32>
    %35 = arith.extui %34 : vector<8x200xi1> to vector<8x200xi32>
    %36 = arith.sitofp %35 : vector<8x200xi32> to vector<8x200xf32>
    %37 = arith.addf %25, %36 : vector<8x200xf32>
    %38 = vector.extract_strided_slice %1 {offsets = [0, 2], sizes = [8, 1], strides = [1, 1]} : vector<8x8xi32> to vector<8x1xi32>
    %c0_i32_9 = arith.constant 0 : i32
    %c20_i32_10 = arith.constant 20 : i32
    %39 = vector.broadcast %c0_i32_9 : i32 to vector<8x1xi32>
    %40 = arith.maxsi %39, %38 : vector<8x1xi32>
    %41 = vector.broadcast %c20_i32_10 : i32 to vector<8x1xi32>
    %42 = arith.minsi %41, %40 : vector<8x1xi32>
    %c53_i32 = arith.constant 53 : i32
    %43 = vector.broadcast %c53_i32 : i32 to vector<8x1xi32>
    %44 = arith.addi %42, %43 : vector<8x1xi32>
    %45 = vector.broadcast %44 : vector<8x1xi32> to vector<8x200xi32>
    %46 = arith.cmpi eq, %3, %45 : vector<8x200xi32>
    %47 = arith.extui %46 : vector<8x200xi1> to vector<8x200xi32>
    %48 = arith.sitofp %47 : vector<8x200xi32> to vector<8x200xf32>
    %49 = arith.addf %37, %48 : vector<8x200xf32>
    %50 = vector.extract_strided_slice %1 {offsets = [0, 3], sizes = [8, 1], strides = [1, 1]} : vector<8x8xi32> to vector<8x1xi32>
    %c0_i32_11 = arith.constant 0 : i32
    %c20_i32_12 = arith.constant 20 : i32
    %51 = vector.broadcast %c0_i32_11 : i32 to vector<8x1xi32>
    %52 = arith.maxsi %51, %50 : vector<8x1xi32>
    %53 = vector.broadcast %c20_i32_12 : i32 to vector<8x1xi32>
    %54 = arith.minsi %53, %52 : vector<8x1xi32>
    %c74_i32 = arith.constant 74 : i32
    %55 = vector.broadcast %c74_i32 : i32 to vector<8x1xi32>
    %56 = arith.addi %54, %55 : vector<8x1xi32>
    %57 = vector.broadcast %56 : vector<8x1xi32> to vector<8x200xi32>
    %58 = arith.cmpi eq, %3, %57 : vector<8x200xi32>
    %59 = arith.extui %58 : vector<8x200xi1> to vector<8x200xi32>
    %60 = arith.sitofp %59 : vector<8x200xi32> to vector<8x200xf32>
    %61 = arith.addf %49, %60 : vector<8x200xf32>
    %62 = vector.extract_strided_slice %1 {offsets = [0, 4], sizes = [8, 1], strides = [1, 1]} : vector<8x8xi32> to vector<8x1xi32>
    %c0_i32_13 = arith.constant 0 : i32
    %c20_i32_14 = arith.constant 20 : i32
    %63 = vector.broadcast %c0_i32_13 : i32 to vector<8x1xi32>
    %64 = arith.maxsi %63, %62 : vector<8x1xi32>
    %65 = vector.broadcast %c20_i32_14 : i32 to vector<8x1xi32>
    %66 = arith.minsi %65, %64 : vector<8x1xi32>
    %c95_i32 = arith.constant 95 : i32
    %67 = vector.broadcast %c95_i32 : i32 to vector<8x1xi32>
    %68 = arith.addi %66, %67 : vector<8x1xi32>
    %69 = vector.broadcast %68 : vector<8x1xi32> to vector<8x200xi32>
    %70 = arith.cmpi eq, %3, %69 : vector<8x200xi32>
    %71 = arith.extui %70 : vector<8x200xi1> to vector<8x200xi32>
    %72 = arith.sitofp %71 : vector<8x200xi32> to vector<8x200xf32>
    %73 = arith.addf %61, %72 : vector<8x200xf32>
    %74 = vector.extract_strided_slice %1 {offsets = [0, 5], sizes = [8, 1], strides = [1, 1]} : vector<8x8xi32> to vector<8x1xi32>
    %c0_i32_15 = arith.constant 0 : i32
    %c20_i32_16 = arith.constant 20 : i32
    %75 = vector.broadcast %c0_i32_15 : i32 to vector<8x1xi32>
    %76 = arith.maxsi %75, %74 : vector<8x1xi32>
    %77 = vector.broadcast %c20_i32_16 : i32 to vector<8x1xi32>
    %78 = arith.minsi %77, %76 : vector<8x1xi32>
    %c116_i32 = arith.constant 116 : i32
    %79 = vector.broadcast %c116_i32 : i32 to vector<8x1xi32>
    %80 = arith.addi %78, %79 : vector<8x1xi32>
    %81 = vector.broadcast %80 : vector<8x1xi32> to vector<8x200xi32>
    %82 = arith.cmpi eq, %3, %81 : vector<8x200xi32>
    %83 = arith.extui %82 : vector<8x200xi1> to vector<8x200xi32>
    %84 = arith.sitofp %83 : vector<8x200xi32> to vector<8x200xf32>
    %85 = arith.addf %73, %84 : vector<8x200xf32>
    %86 = vector.extract_strided_slice %1 {offsets = [0, 6], sizes = [8, 1], strides = [1, 1]} : vector<8x8xi32> to vector<8x1xi32>
    %c0_i32_17 = arith.constant 0 : i32
    %c20_i32_18 = arith.constant 20 : i32
    %87 = vector.broadcast %c0_i32_17 : i32 to vector<8x1xi32>
    %88 = arith.maxsi %87, %86 : vector<8x1xi32>
    %89 = vector.broadcast %c20_i32_18 : i32 to vector<8x1xi32>
    %90 = arith.minsi %89, %88 : vector<8x1xi32>
    %c137_i32 = arith.constant 137 : i32
    %91 = vector.broadcast %c137_i32 : i32 to vector<8x1xi32>
    %92 = arith.addi %90, %91 : vector<8x1xi32>
    %93 = vector.broadcast %92 : vector<8x1xi32> to vector<8x200xi32>
    %94 = arith.cmpi eq, %3, %93 : vector<8x200xi32>
    %95 = arith.extui %94 : vector<8x200xi1> to vector<8x200xi32>
    %96 = arith.sitofp %95 : vector<8x200xi32> to vector<8x200xf32>
    %97 = arith.addf %85, %96 : vector<8x200xf32>
    %98 = vector.extract_strided_slice %1 {offsets = [0, 7], sizes = [8, 1], strides = [1, 1]} : vector<8x8xi32> to vector<8x1xi32>
    %c0_i32_19 = arith.constant 0 : i32
    %c20_i32_20 = arith.constant 20 : i32
    %99 = vector.broadcast %c0_i32_19 : i32 to vector<8x1xi32>
    %100 = arith.maxsi %99, %98 : vector<8x1xi32>
    %101 = vector.broadcast %c20_i32_20 : i32 to vector<8x1xi32>
    %102 = arith.minsi %101, %100 : vector<8x1xi32>
    %c158_i32 = arith.constant 158 : i32
    %103 = vector.broadcast %c158_i32 : i32 to vector<8x1xi32>
    %104 = arith.addi %102, %103 : vector<8x1xi32>
    %105 = vector.broadcast %104 : vector<8x1xi32> to vector<8x200xi32>
    %106 = arith.cmpi eq, %3, %105 : vector<8x200xi32>
    %107 = arith.extui %106 : vector<8x200xi1> to vector<8x200xi32>
    %108 = arith.sitofp %107 : vector<8x200xi32> to vector<8x200xf32>
    %109 = arith.addf %97, %108 : vector<8x200xf32>
    %c0_i32_21 = arith.constant 0 : i32
    %c20_i32_22 = arith.constant 20 : i32
    %110 = vector.broadcast %c0_i32_21 : i32 to vector<8x1xi32>
    %111 = arith.maxsi %110, %2 : vector<8x1xi32>
    %112 = vector.broadcast %c20_i32_22 : i32 to vector<8x1xi32>
    %113 = arith.minsi %112, %111 : vector<8x1xi32>
    %c179_i32 = arith.constant 179 : i32
    %114 = vector.broadcast %c179_i32 : i32 to vector<8x1xi32>
    %115 = arith.addi %113, %114 : vector<8x1xi32>
    %116 = vector.broadcast %115 : vector<8x1xi32> to vector<8x200xi32>
    %117 = arith.cmpi eq, %3, %116 : vector<8x200xi32>
    %118 = arith.extui %117 : vector<8x200xi1> to vector<8x200xi32>
    %119 = arith.sitofp %118 : vector<8x200xi32> to vector<8x200xf32>
    %120 = arith.addf %109, %119 : vector<8x200xf32>
    %c0_23 = arith.constant 0 : index
    %c0_24 = arith.constant 0 : index
    %121 = vector.load %arg4[%c0_23, %c0_24] : memref<200x320xf32, #tpu.memory_space<vmem>>, vector<200x320xf32>
    %cst = arith.constant dense<0.000000e+00> : vector<8x320xf32>
    %122 = tpu.matmul %120, %121, %cst {dimension_numbers = #tpu.dot_dimension_numbers<[1], [0], [0], [1], [0, 0, 1, 1], [], []>, precision = #tpu.contract_precision<fp32>} : vector<8x200xf32>, vector<200x320xf32>, vector<8x320xf32> -> vector<8x320xf32>
    %c0_25 = arith.constant 0 : index
    %c0_26 = arith.constant 0 : index
    %123 = vector.load %arg5[%c0_25, %c0_26] : memref<8x320xf32, #tpu.memory_space<vmem>>, vector<8x320xf32>
    tpu.vector_store %arg5[%c0_25, %c0_26], %122 {strides = array<i32>} : memref<8x320xf32, #tpu.memory_space<vmem>>, vector<8x320xf32>,
    return
  }
  func.func @transform_0(%arg0: i32) -> (i32, i32) {
    %c0_i32 = arith.constant 0 : i32
    %c0_i32_0 = arith.constant 0 : i32
    return %arg0, %c0_i32 : i32, i32
  }
  func.func @transform_1(%arg0: i32) -> (i32, i32) {
    %c0_i32 = arith.constant 0 : i32
    %c0_i32_0 = arith.constant 0 : i32
    return %arg0, %c0_i32 : i32, i32
  }
  func.func @transform_2(%arg0: i32) -> (i32, i32) {
    %c0_i32 = arith.constant 0 : i32
    %c0_i32_0 = arith.constant 0 : i32
    return %arg0, %c0_i32 : i32, i32
  }
  func.func @transform_3(%arg0: i32) -> (i32, i32) {
    %c0_i32 = arith.constant 0 : i32
    %c0_i32_0 = arith.constant 0 : i32
    %c0_i32_1 = arith.constant 0 : i32
    return %c0_i32, %c0_i32_0 : i32, i32
  }
  func.func @transform_4(%arg0: i32) -> (i32, i32) {
    %c0_i32 = arith.constant 0 : i32
    %c0_i32_0 = arith.constant 0 : i32
    return %arg0, %c0_i32 : i32, i32
  }
}

</mosaic_0001>

<llo_original>
// kernel: tpu_custom_call.1
$region0: #{tpu_custom_call.1}
  #allocation0 [shape = 'u32[]', space=smem, size = 0x4, offset = 0x4, fixed_abs, tag = 'smem constant byte address 0x4 - core index']
  #allocation1 [shape = 'u32[144,128]{1,0:T(1,128)}', space=vmem, size = 0x12000, scoped, tag = 'internal scratch']
  %s0 = inlined_call_operand.vmem [shape: s32[8,1], index: 0, kind: input, shape index: {}]
  %s1 = inlined_call_operand.vmem [shape: s32[8,8], index: 1, kind: input, shape index: {}]
  %s2 = inlined_call_operand.vmem [shape: s32[8,1], index: 2, kind: input, shape index: {}]
  %s3 = inlined_call_operand.hbm [shape: f32[200,320], index: 3, kind: input, shape index: {}]
  %s4 = inlined_call_operand.hbm [shape: f32[8,320], index: 4, kind: output, shape index: {}]
  %s5 = sld [smem:[#allocation0]]
  $region30: #{tpu_custom_call.1} parent=0
    _
  %s7 = ssub.s32 1, %s5
  %s8 = scalar_select 0, %s7, %s5
  $region1: #{tpu_custom_call.1} parent=0
    #allocation2 [shape = 'u8[307200]{0}', space=vmem, size = 0x4b000, scoped, tag = 'input window, operand 3, single buffered']
    #allocation3 [shape = 's32[1]{0}', space=sflag, size = 0x4, scoped, tag = 'scoped memory for tpu_custom_call.1']
    #allocation4 [shape = 's32[1]{0}', space=sflag, size = 0x4, scoped, tag = 'scoped memory for tpu_custom_call.1']
    #allocation5 [shape = 'u8[12288]{0}', space=vmem, size = 0x3000, scoped, tag = 'output window, operand 0, single buffered']
    %9 = vsyncpa [#allocation3], 0
    %10 = vsyncpa [#allocation4], 0
    // Predicated region
    $region2: #{tpu_custom_call.1} parent=1 // pred_check
      _
    $region3: #{tpu_custom_call.1} parent=1 // pred_check_branch
      %12 = sbr.rel (0) target = $region5
    $region4: #{tpu_custom_call.1} parent=1 // pred_region
      _
    $region5: #{tpu_custom_call.1} parent=1 // pred_fallthru
      _
    // Predicated region
    $region6: #{tpu_custom_call.1} parent=1 // pred_check
      _
    $region7: #{tpu_custom_call.1} parent=1 // pred_check_branch
      %14 = sbr.rel (0) target = $region9
    $region8: #{tpu_custom_call.1} parent=1 // pred_region
      _
    $region9: #{tpu_custom_call.1} parent=1 // pred_fallthru
      _
    // Predicated region
    $region10: #{tpu_custom_call.1} parent=1 // pred_check
      _
    $region11: #{tpu_custom_call.1} parent=1 // pred_check_branch
      %16 = sbr.rel (0) target = $region13
    $region12: #{tpu_custom_call.1} parent=1 // pred_region
      _
    $region13: #{tpu_custom_call.1} parent=1 // pred_fallthru
      _
    // Predicated region
    $region14: #{tpu_custom_call.1} parent=1 // pred_check
      _
    $region15: #{tpu_custom_call.1} parent=1 // pred_check_branch
      %18 = sbr.rel (0) target = $region17
    $region16: #{tpu_custom_call.1} parent=1 // pred_region
      %s20 = ssub.s32 9600, 9600
      %21 = vsyncadd [#allocation3], %s20
      %s22 = sshll.u32 [#allocation2], 4
      %s23 = int_to_ptr.vmem [resolvable:$true] %s22
      %28 = dma.hbm_to_vmem [thread:$0]  %s3, 9600, %s23, [#allocation3], 384, 384, 24
    $region17: #{tpu_custom_call.1} parent=1 // pred_fallthru
      _
    // Predicated region
    $region18: #{tpu_custom_call.1} parent=1 // pred_check
      _
    $region19: #{tpu_custom_call.1} parent=1 // pred_check_branch
      %30 = sbr.rel (0) target = $region21
    $region20: #{tpu_custom_call.1} parent=1 // pred_region
      %31 = dma.done [#allocation3], 9600
    $region21: #{tpu_custom_call.1} parent=1 // pred_fallthru
      _
    %v32 = vld [vmem:[%s0] sm:$0xff]
    %v33 = vld [vmem:[%s1] sm:$0xff]
    %v34 = vld [vmem:[%s2] sm:$0xff]
    %v35 = vlaneseq
    %v36 = vand.u32 %v35, 127
    %v37 = vadd.s32 %v36, 128
    %vm38 = vcmp.gt.s32.totalorder %v32, 0
    %v39 = vsel %vm38, %v32, 0
    %vm40 = vcmp.lt.s32.totalorder %v39, 10
    %v41 = vsel %vm40, %v39, 10
    %42 = vset.pattern.permute.xlu0 0
    %43 = vperm.xlu0 %42, %v41
    %v44 = vpop.permute.xlu0 %43
    %vm45 = vcmp.eq.s32.totalorder %v36, %v44
    %vm46 = vcmp.eq.s32.totalorder %v37, %v44
    %v47 = vsel %vm45, 1, 0
    %v48 = vsel %vm46, 1, 0
    %v49 = vcvt.s32.f32 %v47
    %v50 = vcvt.s32.f32 %v48
    %vm51 = vcmp.gt.s32.totalorder %v33, 0
    %v52 = vsel %vm51, %v33, 0
    %vm53 = vcmp.lt.s32.totalorder %v52, 20
    %v54 = vsel %vm53, %v52, 20
    %v55 = vadd.s32 %v54, 11
    %56 = vset.pattern.permute.xlu0 0
    %57 = vperm.xlu0 %56, %v55
    %v58 = vpop.permute.xlu0 %57
    %vm59 = vcmp.eq.s32.totalorder %v36, %v58
    %vm60 = vcmp.eq.s32.totalorder %v37, %v58
    %v61 = vsel %vm59, 1, 0
    %v62 = vsel %vm60, 1, 0
    %v63 = vcvt.s32.f32 %v61
    %v64 = vcvt.s32.f32 %v62
    %v65 = vadd.f32 %v49, %v63
    %v66 = vadd.f32 %v50, %v64
    %v67 = vadd.s32 %v54, 32
    %68 = vset.pattern.permute.xlu0 1
    %69 = vperm.xlu0 %68, %v67
    %v70 = vpop.permute.xlu0 %69
    %vm71 = vcmp.eq.s32.totalorder %v36, %v70
    %vm72 = vcmp.eq.s32.totalorder %v37, %v70
    %v73 = vsel %vm71, 1, 0
    %v74 = vsel %vm72, 1, 0
    %v75 = vcvt.s32.f32 %v73
    %v76 = vcvt.s32.f32 %v74
    %v77 = vadd.f32 %v65, %v75
    %v78 = vadd.f32 %v66, %v76
    %v79 = vadd.s32 %v54, 53
    %80 = vset.pattern.permute.xlu0 2
    %81 = vperm.xlu0 %80, %v79
    %v82 = vpop.permute.xlu0 %81
    %vm83 = vcmp.eq.s32.totalorder %v36, %v82
    %vm84 = vcmp.eq.s32.totalorder %v37, %v82
    %v85 = vsel %vm83, 1, 0
    %v86 = vsel %vm84, 1, 0
    %v87 = vcvt.s32.f32 %v85
    %v88 = vcvt.s32.f32 %v86
    %v89 = vadd.f32 %v77, %v87
    %v90 = vadd.f32 %v78, %v88
    %v91 = vadd.s32 %v54, 74
    %92 = vset.pattern.permute.xlu0 3
    %93 = vperm.xlu0 %92, %v91
    %v94 = vpop.permute.xlu0 %93
    %vm95 = vcmp.eq.s32.totalorder %v36, %v94
    %vm96 = vcmp.eq.s32.totalorder %v37, %v94
    %v97 = vsel %vm95, 1, 0
    %v98 = vsel %vm96, 1, 0
    %v99 = vcvt.s32.f32 %v97
    %v100 = vcvt.s32.f32 %v98
    %v101 = vadd.f32 %v89, %v99
    %v102 = vadd.f32 %v90, %v100
    %v103 = vadd.s32 %v54, 95
    %104 = vset.pattern.permute.xlu0 4
    %105 = vperm.xlu0 %104, %v103
    %v106 = vpop.permute.xlu0 %105
    %vm107 = vcmp.eq.s32.totalorder %v36, %v106
    %vm108 = vcmp.eq.s32.totalorder %v37, %v106
    %v109 = vsel %vm107, 1, 0
    %v110 = vsel %vm108, 1, 0
    %v111 = vcvt.s32.f32 %v109
    %v112 = vcvt.s32.f32 %v110
    %v113 = vadd.f32 %v101, %v111
    %v114 = vadd.f32 %v102, %v112
    %v115 = vadd.s32 %v54, 116
    %116 = vset.pattern.permute.xlu0 5
    %117 = vperm.xlu0 %116, %v115
    %v118 = vpop.permute.xlu0 %117
    %vm119 = vcmp.eq.s32.totalorder %v36, %v118
    %vm120 = vcmp.eq.s32.totalorder %v37, %v118
    %v121 = vsel %vm119, 1, 0
    %v122 = vsel %vm120, 1, 0
    %v123 = vcvt.s32.f32 %v121
    %v124 = vcvt.s32.f32 %v122
    %v125 = vadd.f32 %v113, %v123
    %v126 = vadd.f32 %v114, %v124
    %v127 = vadd.s32 %v54, 137
    %128 = vset.pattern.permute.xlu0 6
    %129 = vperm.xlu0 %128, %v127
    %v130 = vpop.permute.xlu0 %129
    %vm131 = vcmp.eq.s32.totalorder %v36, %v130
    %vm132 = vcmp.eq.s32.totalorder %v37, %v130
    %v133 = vsel %vm131, 1, 0
    %v134 = vsel %vm132, 1, 0
    %v135 = vcvt.s32.f32 %v133
    %v136 = vcvt.s32.f32 %v134
    %v137 = vadd.f32 %v125, %v135
    %v138 = vadd.f32 %v126, %v136
    %v139 = vadd.s32 %v54, 158
    %140 = vset.pattern.permute.xlu0 7
    %141 = vperm.xlu0 %140, %v139
    %v142 = vpop.permute.xlu0 %141
    %vm143 = vcmp.eq.s32.totalorder %v36, %v142
    %vm144 = vcmp.eq.s32.totalorder %v37, %v142
    %v145 = vsel %vm143, 1, 0
    %v146 = vsel %vm144, 1, 0
    %v147 = vcvt.s32.f32 %v145
    %v148 = vcvt.s32.f32 %v146
    %v149 = vadd.f32 %v137, %v147
    %v150 = vadd.f32 %v138, %v148
    %vm151 = vcmp.gt.s32.totalorder %v34, 0
    %v152 = vsel %vm151, %v34, 0
    %vm153 = vcmp.lt.s32.totalorder %v152, 20
    %v154 = vsel %vm153, %v152, 20
    %v155 = vadd.s32 %v154, 179
    %156 = vset.pattern.permute.xlu0 0
    %157 = vperm.xlu0 %156, %v155
    %v158 = vpop.permute.xlu0 %157
    %vm159 = vcmp.eq.s32.totalorder %v36, %v158
    %vm160 = vcmp.eq.s32.totalorder %v37, %v158
    %v161 = vsel %vm159, 1, 0
    %v162 = vsel %vm160, 1, 0
    %v163 = vcvt.s32.f32 %v161
    %v164 = vcvt.s32.f32 %v162
    %v165 = vadd.f32 %v149, %v163
    %v166 = vadd.f32 %v150, %v164
    %v167 = vld [vmem:[#allocation2] sm:$0xff]
    %v168 = vld [vmem:[#allocation2 + $0x8] sm:$0xff]
    %v169 = vld [vmem:[#allocation2 + $0x10] sm:$0xff]
    %v170 = vld [vmem:[#allocation2 + $0x18] sm:$0xff]
    %v171 = vld [vmem:[#allocation2 + $0x20] sm:$0xff]
    %v172 = vld [vmem:[#allocation2 + $0x28] sm:$0xff]
    %v173 = vld [vmem:[#allocation2 + $0x30] sm:$0xff]
    %v174 = vld [vmem:[#allocation2 + $0x38] sm:$0xff]
    %v175 = vld [vmem:[#allocation2 + $0x40] sm:$0xff]
    %v176 = vld [vmem:[#allocation2 + $0x48] sm:$0xff]
    %v177 = vld [vmem:[#allocation2 + $0x50] sm:$0xff]
    %v178 = vld [vmem:[#allocation2 + $0x58] sm:$0xff]
    %v179 = vld [vmem:[#allocation2 + $0x60] sm:$0xff]
    %v180 = vld [vmem:[#allocation2 + $0x68] sm:$0xff]
    %v181 = vld [vmem:[#allocation2 + $0x70] sm:$0xff]
    %v182 = vld [vmem:[#allocation2 + $0x78] sm:$0xff]
    %v183 = vld [vmem:[#allocation2 + $0x80] sm:$0xff]
    %v184 = vld [vmem:[#allocation2 + $0x88] sm:$0xff]
    %v185 = vld [vmem:[#allocation2 + $0x90] sm:$0xff]
    %v186 = vld [vmem:[#allocation2 + $0x98] sm:$0xff]
    %v187 = vld [vmem:[#allocation2 + $0xa0] sm:$0xff]
    %v188 = vld [vmem:[#allocation2 + $0xa8] sm:$0xff]
    %v189 = vld [vmem:[#allocation2 + $0xb0] sm:$0xff]
    %v190 = vld [vmem:[#allocation2 + $0xb8] sm:$0xff]
    %v191 = vld [vmem:[#allocation2 + $0xc0] sm:$0xff]
    %v192 = vld [vmem:[#allocation2 + $0xc8] sm:$0xff]
    %v193 = vld [vmem:[#allocation2 + $0xd0] sm:$0xff]
    %v194 = vld [vmem:[#allocation2 + $0xd8] sm:$0xff]
    %v195 = vld [vmem:[#allocation2 + $0xe0] sm:$0xff]
    %v196 = vld [vmem:[#allocation2 + $0xe8] sm:$0xff]
    %v197 = vld [vmem:[#allocation2 + $0xf0] sm:$0xff]
    %v198 = vld [vmem:[#allocation2 + $0xf8] sm:$0xff]
    %v199 = vld [vmem:[#allocation2 + $0x100] sm:$0xff]
    %v200 = vld [vmem:[#allocation2 + $0x108] sm:$0xff]
    %v201 = vld [vmem:[#allocation2 + $0x110] sm:$0xff]
    %v202 = vld [vmem:[#allocation2 + $0x118] sm:$0xff]
    %v203 = vld [vmem:[#allocation2 + $0x120] sm:$0xff]
    %v204 = vld [vmem:[#allocation2 + $0x128] sm:$0xff]
    %v205 = vld [vmem:[#allocation2 + $0x130] sm:$0xff]
    %v206 = vld [vmem:[#allocation2 + $0x138] sm:$0xff]
    %v207 = vld [vmem:[#allocation2 + $0x140] sm:$0xff]
    %v208 = vld [vmem:[#allocation2 + $0x148] sm:$0xff]
    %v209 = vld [vmem:[#allocation2 + $0x150] sm:$0xff]
    %v210 = vld [vmem:[#allocation2 + $0x158] sm:$0xff]
    %v211 = vld [vmem:[#allocation2 + $0x160] sm:$0xff]
    %v212 = vld [vmem:[#allocation2 + $0x168] sm:$0xff]
    %v213 = vld [vmem:[#allocation2 + $0x170] sm:$0xff]
    %v214 = vld [vmem:[#allocation2 + $0x178] sm:$0xff]
    %v215 = vld [vmem:[#allocation2 + $0x180] sm:$0xff]
    %v216 = vld [vmem:[#allocation2 + $0x188] sm:$0xff]
    %v217 = vld [vmem:[#allocation2 + $0x190] sm:$0xff]
    %v218 = vld [vmem:[#allocation2 + $0x198] sm:$0xff]
    %v219 = vld [vmem:[#allocation2 + $0x1a0] sm:$0xff]
    %v220 = vld [vmem:[#allocation2 + $0x1a8] sm:$0xff]
    %v221 = vld [vmem:[#allocation2 + $0x1b0] sm:$0xff]
    %v222 = vld [vmem:[#allocation2 + $0x1b8] sm:$0xff]
    %v223 = vld [vmem:[#allocation2 + $0x1c0] sm:$0xff]
    %v224 = vld [vmem:[#allocation2 + $0x1c8] sm:$0xff]
    %v225 = vld [vmem:[#allocation2 + $0x1d0] sm:$0xff]
    %v226 = vld [vmem:[#allocation2 + $0x1d8] sm:$0xff]
    %v227 = vld [vmem:[#allocation2 + $0x1e0] sm:$0xff]
    %v228 = vld [vmem:[#allocation2 + $0x1e8] sm:$0xff]
    %v229 = vld [vmem:[#allocation2 + $0x1f0] sm:$0xff]
    %v230 = vld [vmem:[#allocation2 + $0x1f8] sm:$0xff]
    %v231 = vld [vmem:[#allocation2 + $0x200] sm:$0xff]
    %v232 = vld [vmem:[#allocation2 + $0x208] sm:$0xff]
    %v233 = vld [vmem:[#allocation2 + $0x210] sm:$0xff]
    %v234 = vld [vmem:[#allocation2 + $0x218] sm:$0xff]
    %v235 = vld [vmem:[#allocation2 + $0x220] sm:$0xff]
    %v236 = vld [vmem:[#allocation2 + $0x228] sm:$0xff]
    %v237 = vld [vmem:[#allocation2 + $0x230] sm:$0xff]
    %v238 = vld [vmem:[#allocation2 + $0x238] sm:$0xff]
    %v239 = vld [vmem:[#allocation2 + $0x240] sm:$0xff]
    %v240 = vld [vmem:[#allocation2 + $0x248] sm:$0xff]
    %v241 = vld [vmem:[#allocation2 + $0x250] sm:$0xff]
    %vm242 = vcmask 588800
    %v244 = vsel %vm242, %v166, 0
    %v246 = vand.u32 %v213, 4294901760
    %247 = vmatprep.subr.mxu0 %v246
    %v248 = vand.u32 %v212, 4294901760
    %249 = vmatpush1.msra.mxu0 %v248
    %v250 = vand.u32 %v210, 4294901760
    %251 = vmatprep.subr.mxu0 %v250
    %v252 = vand.u32 %v209, 4294901760
    %253 = vmatpush1.msra.mxu0 %v252
    %v254 = vand.u32 %v207, 4294901760
    %255 = vmatprep.subr.mxu0 %v254
    %v256 = vand.u32 %v206, 4294901760
    %257 = vmatpush1.msra.mxu0 %v256
    %v258 = vand.u32 %v204, 4294901760
    %259 = vmatprep.subr.mxu0 %v258
    %v260 = vand.u32 %v203, 4294901760
    %261 = vmatpush1.msra.mxu0 %v260
    %v262 = vand.u32 %v201, 4294901760
    %263 = vmatprep.subr.mxu0 %v262
    %v264 = vand.u32 %v200, 4294901760
    %265 = vmatpush1.msra.mxu0 %v264
    %v266 = vand.u32 %v198, 4294901760
    %267 = vmatprep.subr.mxu0 %v266
    %v268 = vand.u32 %v197, 4294901760
    %269 = vmatpush1.msra.mxu0 %v268
    %v270 = vand.u32 %v195, 4294901760
    %271 = vmatprep.subr.mxu0 %v270
    %v272 = vand.u32 %v194, 4294901760
    %273 = vmatpush1.msra.mxu0 %v272
    %v274 = vand.u32 %v192, 4294901760
    %275 = vmatprep.subr.mxu0 %v274
    %v276 = vand.u32 %v191, 4294901760
    %277 = vmatpush1.msra.mxu0 %v276
    %v278 = vand.u32 %v189, 4294901760
    %279 = vmatprep.subr.mxu0 %v278
    %v280 = vand.u32 %v188, 4294901760
    %281 = vmatpush1.msra.mxu0 %v280
    %v282 = vand.u32 %v186, 4294901760
    %283 = vmatprep.subr.mxu0 %v282
    %v284 = vand.u32 %v185, 4294901760
    %285 = vmatpush1.msra.mxu0 %v284
    %v286 = vand.u32 %v183, 4294901760
    %287 = vmatprep.subr.mxu0 %v286
    %v288 = vand.u32 %v182, 4294901760
    %289 = vmatpush1.msra.mxu0 %v288
    %v290 = vand.u32 %v180, 4294901760
    %291 = vmatprep.subr.mxu0 %v290
    %v292 = vand.u32 %v179, 4294901760
    %293 = vmatpush1.msra.mxu0 %v292
    %v294 = vand.u32 %v177, 4294901760
    %295 = vmatprep.subr.mxu0 %v294
    %v296 = vand.u32 %v176, 4294901760
    %297 = vmatpush1.msra.mxu0 %v296
    %v298 = vand.u32 %v174, 4294901760
    %299 = vmatprep.subr.mxu0 %v298
    %v300 = vand.u32 %v173, 4294901760
    %301 = vmatpush1.msra.mxu0 %v300
    %v302 = vand.u32 %v171, 4294901760
    %303 = vmatprep.subr.mxu0 %v302
    %v304 = vand.u32 %v170, 4294901760
    %305 = vmatpush1.msra.mxu0 %v304
    %v306 = vand.u32 %v168, 4294901760
    %307 = vmatprep.subr.mxu0 %v306
    %v308 = vand.u32 %v167, 4294901760
    %309 = vmatpush1.msra.mxu0 %v308
    %310 = vmatprep.subr.mxu0 0.0
    %311 = vmatpush2.msra.mxu0 0.0
    %312 = vmatprep.subr.mxu0 0.0
    %313 = vmatpush2.msra.mxu0 0.0
    %314 = vmatprep.subr.mxu0 0.0
    %315 = vmatpush2.msra.mxu0 0.0
    %316 = vmatprep.subr.mxu0 0.0
    %317 = vmatpush2.msra.mxu0 0.0
    %318 = vmatprep.subr.mxu0 0.0
    %319 = vmatpush2.msra.mxu0 0.0
    %320 = vmatprep.subr.mxu0 0.0
    %321 = vmatpush2.msra.mxu0 0.0
    %322 = vmatprep.subr.mxu0 0.0
    %323 = vmatpush2.msra.mxu0 0.0
    %v324 = vand.u32 %v240, 4294901760
    %325 = vmatprep.subr.mxu0 %v324
    %v326 = vand.u32 %v239, 4294901760
    %327 = vmatpush2.msra.mxu0 %v326
    %v328 = vand.u32 %v237, 4294901760
    %329 = vmatprep.subr.mxu0 %v328
    %v330 = vand.u32 %v236, 4294901760
    %331 = vmatpush2.msra.mxu0 %v330
    %v332 = vand.u32 %v234, 4294901760
    %333 = vmatprep.subr.mxu0 %v332
    %v334 = vand.u32 %v233, 4294901760
    %335 = vmatpush2.msra.mxu0 %v334
    %v336 = vand.u32 %v231, 4294901760
    %337 = vmatprep.subr.mxu0 %v336
    %v338 = vand.u32 %v230, 4294901760
    %339 = vmatpush2.msra.mxu0 %v338
    %v340 = vand.u32 %v228, 4294901760
    %341 = vmatprep.subr.mxu0 %v340
    %v342 = vand.u32 %v227, 4294901760
    %343 = vmatpush2.msra.mxu0 %v342
    %v344 = vand.u32 %v225, 4294901760
    %345 = vmatprep.subr.mxu0 %v344
    %v346 = vand.u32 %v224, 4294901760
    %347 = vmatpush2.msra.mxu0 %v346
    %v348 = vand.u32 %v222, 4294901760
    %349 = vmatprep.subr.mxu0 %v348
    %v350 = vand.u32 %v221, 4294901760
    %351 = vmatpush2.msra.mxu0 %v350
    %v352 = vand.u32 %v219, 4294901760
    %353 = vmatprep.subr.mxu0 %v352
    %v354 = vand.u32 %v218, 4294901760
    %355 = vmatpush2.msra.mxu0 %v354
    %v356 = vand.u32 %v216, 4294901760
    %357 = vmatprep.subr.mxu0 %v356
    %v358 = vand.u32 %v215, 4294901760
    %359 = vmatpush2.msra.mxu0 %v358
    %v360 = vand.u32 %v244, 4294901760
    %v361 = vsub.f32 %v244, %v360
    %v362 = vand.u32 %v361, 4294901760
    %v363 = vsub.f32 %v361, %v362
    %v364 = vand.u32 %v363, 4294901760
    %365 = vmatprep.mubr.f32.mxu0 %v364
    %v366 = vand.u32 %v165, 4294901760
    %v367 = vsub.f32 %v165, %v366
    %v368 = vand.u32 %v367, 4294901760
    %v369 = vsub.f32 %v367, %v368
    %v370 = vand.u32 %v369, 4294901760
    %371 = vmatmul.mubr.f32.gmra.mxu0 %v370
    %v372 = vpop.f32.mrf.mxu0
    %v373 = vadd.f32 0.0, %v372
    %v374 = vpop.f32.mrf.mxu0
    %v375 = vadd.f32 0.0, %v374
    %376 = vdwg.mxu0
    %v377 = vand.u32 %v213, 4294901760
    %v378 = vsub.f32 %v213, %v377
    %v379 = vand.u32 %v378, 4294901760
    %v380 = vsub.f32 %v378, %v379
    %v381 = vand.u32 %v380, 4294901760
    %382 = vmatprep.subr.mxu0 %v381
    %v383 = vand.u32 %v212, 4294901760
    %v384 = vsub.f32 %v212, %v383
    %v385 = vand.u32 %v384, 4294901760
    %v386 = vsub.f32 %v384, %v385
    %v387 = vand.u32 %v386, 4294901760
    %388 = vmatpush1.msra.mxu0 %v387
    %v389 = vand.u32 %v210, 4294901760
    %v390 = vsub.f32 %v210, %v389
    %v391 = vand.u32 %v390, 4294901760
    %v392 = vsub.f32 %v390, %v391
    %v393 = vand.u32 %v392, 4294901760
    %394 = vmatprep.subr.mxu0 %v393
    %v395 = vand.u32 %v209, 4294901760
    %v396 = vsub.f32 %v209, %v395
    %v397 = vand.u32 %v396, 4294901760
    %v398 = vsub.f32 %v396, %v397
    %v399 = vand.u32 %v398, 4294901760
    %400 = vmatpush1.msra.mxu0 %v399
    %v401 = vand.u32 %v207, 4294901760
    %v402 = vsub.f32 %v207, %v401
    %v403 = vand.u32 %v402, 4294901760
    %v404 = vsub.f32 %v402, %v403
    %v405 = vand.u32 %v404, 4294901760
    %406 = vmatprep.subr.mxu0 %v405
    %v407 = vand.u32 %v206, 4294901760
    %v408 = vsub.f32 %v206, %v407
    %v409 = vand.u32 %v408, 4294901760
    %v410 = vsub.f32 %v408, %v409
    %v411 = vand.u32 %v410, 4294901760
    %412 = vmatpush1.msra.mxu0 %v411
    %v413 = vand.u32 %v204, 4294901760
    %v414 = vsub.f32 %v204, %v413
    %v415 = vand.u32 %v414, 4294901760
    %v416 = vsub.f32 %v414, %v415
    %v417 = vand.u32 %v416, 4294901760
    %418 = vmatprep.subr.mxu0 %v417
    %v419 = vand.u32 %v203, 4294901760
    %v420 = vsub.f32 %v203, %v419
    %v421 = vand.u32 %v420, 4294901760
    %v422 = vsub.f32 %v420, %v421
    %v423 = vand.u32 %v422, 4294901760
    %424 = vmatpush1.msra.mxu0 %v423
    %v425 = vand.u32 %v201, 4294901760
    %v426 = vsub.f32 %v201, %v425
    %v427 = vand.u32 %v426, 4294901760
    %v428 = vsub.f32 %v426, %v427
    %v429 = vand.u32 %v428, 4294901760
    %430 = vmatprep.subr.mxu0 %v429
    %v431 = vand.u32 %v200, 4294901760
    %v432 = vsub.f32 %v200, %v431
    %v433 = vand.u32 %v432, 4294901760
    %v434 = vsub.f32 %v432, %v433
    %v435 = vand.u32 %v434, 4294901760
    %436 = vmatpush1.msra.mxu0 %v435
    %v437 = vand.u32 %v198, 4294901760
    %v438 = vsub.f32 %v198, %v437
    %v439 = vand.u32 %v438, 4294901760
    %v440 = vsub.f32 %v438, %v439
    %v441 = vand.u32 %v440, 4294901760
    %442 = vmatprep.subr.mxu0 %v441
    %v443 = vand.u32 %v197, 4294901760
    %v444 = vsub.f32 %v197, %v443
    %v445 = vand.u32 %v444, 4294901760
    %v446 = vsub.f32 %v444, %v445
    %v447 = vand.u32 %v446, 4294901760
    %448 = vmatpush1.msra.mxu0 %v447
    %v449 = vand.u32 %v195, 4294901760
    %v450 = vsub.f32 %v195, %v449
    %v451 = vand.u32 %v450, 4294901760
    %v452 = vsub.f32 %v450, %v451
    %v453 = vand.u32 %v452, 4294901760
    %454 = vmatprep.subr.mxu0 %v453
    %v455 = vand.u32 %v194, 4294901760
    %v456 = vsub.f32 %v194, %v455
    %v457 = vand.u32 %v456, 4294901760
    %v458 = vsub.f32 %v456, %v457
    %v459 = vand.u32 %v458, 4294901760
    %460 = vmatpush1.msra.mxu0 %v459
    %v461 = vand.u32 %v192, 4294901760
    %v462 = vsub.f32 %v192, %v461
    %v463 = vand.u32 %v462, 4294901760
    %v464 = vsub.f32 %v462, %v463
    %v465 = vand.u32 %v464, 4294901760
    %466 = vmatprep.subr.mxu0 %v465
    %v467 = vand.u32 %v191, 4294901760
    %v468 = vsub.f32 %v191, %v467
    %v469 = vand.u32 %v468, 4294901760
    %v470 = vsub.f32 %v468, %v469
    %v471 = vand.u32 %v470, 4294901760
    %472 = vmatpush1.msra.mxu0 %v471
    %v473 = vand.u32 %v189, 4294901760
    %v474 = vsub.f32 %v189, %v473
    %v475 = vand.u32 %v474, 4294901760
    %v476 = vsub.f32 %v474, %v475
    %v477 = vand.u32 %v476, 4294901760
    %478 = vmatprep.subr.mxu0 %v477
    %v479 = vand.u32 %v188, 4294901760
    %v480 = vsub.f32 %v188, %v479
    %v481 = vand.u32 %v480, 4294901760
    %v482 = vsub.f32 %v480, %v481
    %v483 = vand.u32 %v482, 4294901760
    %484 = vmatpush1.msra.mxu0 %v483
    %v485 = vand.u32 %v186, 4294901760
    %v486 = vsub.f32 %v186, %v485
    %v487 = vand.u32 %v486, 4294901760
    %v488 = vsub.f32 %v486, %v487
    %v489 = vand.u32 %v488, 4294901760
    %490 = vmatprep.subr.mxu0 %v489
    %v491 = vand.u32 %v185, 4294901760
    %v492 = vsub.f32 %v185, %v491
    %v493 = vand.u32 %v492, 4294901760
    %v494 = vsub.f32 %v492, %v493
    %v495 = vand.u32 %v494, 4294901760
    %496 = vmatpush1.msra.mxu0 %v495
    %v497 = vand.u32 %v183, 4294901760
    %v498 = vsub.f32 %v183, %v497
    %v499 = vand.u32 %v498, 4294901760
    %v500 = vsub.f32 %v498, %v499
    %v501 = vand.u32 %v500, 4294901760
    %502 = vmatprep.subr.mxu0 %v501
    %v503 = vand.u32 %v182, 4294901760
    %v504 = vsub.f32 %v182, %v503
    %v505 = vand.u32 %v504, 4294901760
    %v506 = vsub.f32 %v504, %v505
    %v507 = vand.u32 %v506, 4294901760
    %508 = vmatpush1.msra.mxu0 %v507
    %v509 = vand.u32 %v180, 4294901760
    %v510 = vsub.f32 %v180, %v509
    %v511 = vand.u32 %v510, 4294901760
    %v512 = vsub.f32 %v510, %v511
    %v513 = vand.u32 %v512, 4294901760
    %514 = vmatprep.subr.mxu0 %v513
    %v515 = vand.u32 %v179, 4294901760
    %v516 = vsub.f32 %v179, %v515
    %v517 = vand.u32 %v516, 4294901760
    %v518 = vsub.f32 %v516, %v517
    %v519 = vand.u32 %v518, 4294901760
    %520 = vmatpush1.msra.mxu0 %v519
    %v521 = vand.u32 %v177, 4294901760
    %v522 = vsub.f32 %v177, %v521
    %v523 = vand.u32 %v522, 4294901760
    %v524 = vsub.f32 %v522, %v523
    %v525 = vand.u32 %v524, 4294901760
    %526 = vmatprep.subr.mxu0 %v525
    %v527 = vand.u32 %v176, 4294901760
    %v528 = vsub.f32 %v176, %v527
    %v529 = vand.u32 %v528, 4294901760
    %v530 = vsub.f32 %v528, %v529
    %v531 = vand.u32 %v530, 4294901760
    %532 = vmatpush1.msra.mxu0 %v531
    %v533 = vand.u32 %v174, 4294901760
    %v534 = vsub.f32 %v174, %v533
    %v535 = vand.u32 %v534, 4294901760
    %v536 = vsub.f32 %v534, %v535
    %v537 = vand.u32 %v536, 4294901760
    %538 = vmatprep.subr.mxu0 %v537
    %v539 = vand.u32 %v173, 4294901760
    %v540 = vsub.f32 %v173, %v539
    %v541 = vand.u32 %v540, 4294901760
    %v542 = vsub.f32 %v540, %v541
    %v543 = vand.u32 %v542, 4294901760
    %544 = vmatpush1.msra.mxu0 %v543
    %v545 = vand.u32 %v171, 4294901760
    %v546 = vsub.f32 %v171, %v545
    %v547 = vand.u32 %v546, 4294901760
    %v548 = vsub.f32 %v546, %v547
    %v549 = vand.u32 %v548, 4294901760
    %550 = vmatprep.subr.mxu0 %v549
    %v551 = vand.u32 %v170, 4294901760
    %v552 = vsub.f32 %v170, %v551
    %v553 = vand.u32 %v552, 4294901760
    %v554 = vsub.f32 %v552, %v553
    %v555 = vand.u32 %v554, 4294901760
    %556 = vmatpush1.msra.mxu0 %v555
    %v557 = vand.u32 %v168, 4294901760
    %v558 = vsub.f32 %v168, %v557
    %v559 = vand.u32 %v558, 4294901760
    %v560 = vsub.f32 %v558, %v559
    %v561 = vand.u32 %v560, 4294901760
    %562 = vmatprep.subr.mxu0 %v561
    %v563 = vand.u32 %v167, 4294901760
    %v564 = vsub.f32 %v167, %v563
    %v565 = vand.u32 %v564, 4294901760
    %v566 = vsub.f32 %v564, %v565
    %v567 = vand.u32 %v566, 4294901760
    %568 = vmatpush1.msra.mxu0 %v567
    %569 = vmatprep.subr.mxu0 0.0
    %570 = vmatpush2.msra.mxu0 0.0
    %571 = vmatprep.subr.mxu0 0.0
    %572 = vmatpush2.msra.mxu0 0.0
    %573 = vmatprep.subr.mxu0 0.0
    %574 = vmatpush2.msra.mxu0 0.0
    %575 = vmatprep.subr.mxu0 0.0
    %576 = vmatpush2.msra.mxu0 0.0
    %577 = vmatprep.subr.mxu0 0.0
    %578 = vmatpush2.msra.mxu0 0.0
    %579 = vmatprep.subr.mxu0 0.0
    %580 = vmatpush2.msra.mxu0 0.0
    %581 = vmatprep.subr.mxu0 0.0
    %582 = vmatpush2.msra.mxu0 0.0
    %v583 = vand.u32 %v240, 4294901760
    %v584 = vsub.f32 %v240, %v583
    %v585 = vand.u32 %v584, 4294901760
    %v586 = vsub.f32 %v584, %v585
    %v587 = vand.u32 %v586, 4294901760
    %588 = vmatprep.subr.mxu0 %v587
    %v589 = vand.u32 %v239, 4294901760
    %v590 = vsub.f32 %v239, %v589
    %v591 = vand.u32 %v590, 4294901760
    %v592 = vsub.f32 %v590, %v591
    %v593 = vand.u32 %v592, 4294901760
    %594 = vmatpush2.msra.mxu0 %v593
    %v595 = vand.u32 %v237, 4294901760
    %v596 = vsub.f32 %v237, %v595
    %v597 = vand.u32 %v596, 4294901760
    %v598 = vsub.f32 %v596, %v597
    %v599 = vand.u32 %v598, 4294901760
    %600 = vmatprep.subr.mxu0 %v599
    %v601 = vand.u32 %v236, 4294901760
    %v602 = vsub.f32 %v236, %v601
    %v603 = vand.u32 %v602, 4294901760
    %v604 = vsub.f32 %v602, %v603
    %v605 = vand.u32 %v604, 4294901760
    %606 = vmatpush2.msra.mxu0 %v605
    %v607 = vand.u32 %v234, 4294901760
    %v608 = vsub.f32 %v234, %v607
    %v609 = vand.u32 %v608, 4294901760
    %v610 = vsub.f32 %v608, %v609
    %v611 = vand.u32 %v610, 4294901760
    %612 = vmatprep.subr.mxu0 %v611
    %v613 = vand.u32 %v233, 4294901760
    %v614 = vsub.f32 %v233, %v613
    %v615 = vand.u32 %v614, 4294901760
    %v616 = vsub.f32 %v614, %v615
    %v617 = vand.u32 %v616, 4294901760
    %618 = vmatpush2.msra.mxu0 %v617
    %v619 = vand.u32 %v231, 4294901760
    %v620 = vsub.f32 %v231, %v619
    %v621 = vand.u32 %v620, 4294901760
    %v622 = vsub.f32 %v620, %v621
    %v623 = vand.u32 %v622, 4294901760
    %624 = vmatprep.subr.mxu0 %v623
    %v625 = vand.u32 %v230, 4294901760
    %v626 = vsub.f32 %v230, %v625
    %v627 = vand.u32 %v626, 4294901760
    %v628 = vsub.f32 %v626, %v627
    %v629 = vand.u32 %v628, 4294901760
    %630 = vmatpush2.msra.mxu0 %v629
    %v631 = vand.u32 %v228, 4294901760
    %v632 = vsub.f32 %v228, %v631
    %v633 = vand.u32 %v632, 4294901760
    %v634 = vsub.f32 %v632, %v633
    %v635 = vand.u32 %v634, 4294901760
    %636 = vmatprep.subr.mxu0 %v635
    %v637 = vand.u32 %v227, 4294901760
    %v638 = vsub.f32 %v227, %v637
    %v639 = vand.u32 %v638, 4294901760
    %v640 = vsub.f32 %v638, %v639
    %v641 = vand.u32 %v640, 4294901760
    %642 = vmatpush2.msra.mxu0 %v641
    %v643 = vand.u32 %v225, 4294901760
    %v644 = vsub.f32 %v225, %v643
    %v645 = vand.u32 %v644, 4294901760
    %v646 = vsub.f32 %v644, %v645
    %v647 = vand.u32 %v646, 4294901760
    %648 = vmatprep.subr.mxu0 %v647
    %v649 = vand.u32 %v224, 4294901760
    %v650 = vsub.f32 %v224, %v649
    %v651 = vand.u32 %v650, 4294901760
    %v652 = vsub.f32 %v650, %v651
    %v653 = vand.u32 %v652, 4294901760
    %654 = vmatpush2.msra.mxu0 %v653
    %v655 = vand.u32 %v222, 4294901760
    %v656 = vsub.f32 %v222, %v655
    %v657 = vand.u32 %v656, 4294901760
    %v658 = vsub.f32 %v656, %v657
    %v659 = vand.u32 %v658, 4294901760
    %660 = vmatprep.subr.mxu0 %v659
    %v661 = vand.u32 %v221, 4294901760
    %v662 = vsub.f32 %v221, %v661
    %v663 = vand.u32 %v662, 4294901760
    %v664 = vsub.f32 %v662, %v663
    %v665 = vand.u32 %v664, 4294901760
    %666 = vmatpush2.msra.mxu0 %v665
    %v667 = vand.u32 %v219, 4294901760
    %v668 = vsub.f32 %v219, %v667
    %v669 = vand.u32 %v668, 4294901760
    %v670 = vsub.f32 %v668, %v669
    %v671 = vand.u32 %v670, 4294901760
    %672 = vmatprep.subr.mxu0 %v671
    %v673 = vand.u32 %v218, 4294901760
    %v674 = vsub.f32 %v218, %v673
    %v675 = vand.u32 %v674, 4294901760
    %v676 = vsub.f32 %v674, %v675
    %v677 = vand.u32 %v676, 4294901760
    %678 = vmatpush2.msra.mxu0 %v677
    %v679 = vand.u32 %v216, 4294901760
    %v680 = vsub.f32 %v216, %v679
    %v681 = vand.u32 %v680, 4294901760
    %v682 = vsub.f32 %v680, %v681
    %v683 = vand.u32 %v682, 4294901760
    %684 = vmatprep.subr.mxu0 %v683
    %v685 = vand.u32 %v215, 4294901760
    %v686 = vsub.f32 %v215, %v685
    %v687 = vand.u32 %v686, 4294901760
    %v688 = vsub.f32 %v686, %v687
    %v689 = vand.u32 %v688, 4294901760
    %690 = vmatpush2.msra.mxu0 %v689
    %v691 = vand.u32 %v244, 4294901760
    %692 = vmatprep.mubr.f32.mxu0 %v691
    %v693 = vand.u32 %v165, 4294901760
    %694 = vmatmul.mubr.f32.gmra.mxu0 %v693
    %v695 = vpop.f32.mrf.mxu0
    %v696 = vadd.f32 %v373, %v695
    %v697 = vpop.f32.mrf.mxu0
    %v698 = vadd.f32 %v375, %v697
    %699 = vdwg.mxu0
    %v700 = vand.u32 %v213, 4294901760
    %v701 = vsub.f32 %v213, %v700
    %702 = vmatprep.subr.mxu0 %v701
    %v703 = vand.u32 %v212, 4294901760
    %v704 = vsub.f32 %v212, %v703
    %705 = vmatpush1.msra.mxu0 %v704
    %v706 = vand.u32 %v210, 4294901760
    %v707 = vsub.f32 %v210, %v706
    %708 = vmatprep.subr.mxu0 %v707
    %v709 = vand.u32 %v209, 4294901760
    %v710 = vsub.f32 %v209, %v709
    %711 = vmatpush1.msra.mxu0 %v710
    %v712 = vand.u32 %v207, 4294901760
    %v713 = vsub.f32 %v207, %v712
    %714 = vmatprep.subr.mxu0 %v713
    %v715 = vand.u32 %v206, 4294901760
    %v716 = vsub.f32 %v206, %v715
    %717 = vmatpush1.msra.mxu0 %v716
    %v718 = vand.u32 %v204, 4294901760
    %v719 = vsub.f32 %v204, %v718
    %720 = vmatprep.subr.mxu0 %v719
    %v721 = vand.u32 %v203, 4294901760
    %v722 = vsub.f32 %v203, %v721
    %723 = vmatpush1.msra.mxu0 %v722
    %v724 = vand.u32 %v201, 4294901760
    %v725 = vsub.f32 %v201, %v724
    %726 = vmatprep.subr.mxu0 %v725
    %v727 = vand.u32 %v200, 4294901760
    %v728 = vsub.f32 %v200, %v727
    %729 = vmatpush1.msra.mxu0 %v728
    %v730 = vand.u32 %v198, 4294901760
    %v731 = vsub.f32 %v198, %v730
    %732 = vmatprep.subr.mxu0 %v731
    %v733 = vand.u32 %v197, 4294901760
    %v734 = vsub.f32 %v197, %v733
    %735 = vmatpush1.msra.mxu0 %v734
    %v736 = vand.u32 %v195, 4294901760
    %v737 = vsub.f32 %v195, %v736
    %738 = vmatprep.subr.mxu0 %v737
    %v739 = vand.u32 %v194, 4294901760
    %v740 = vsub.f32 %v194, %v739
    %741 = vmatpush1.msra.mxu0 %v740
    %v742 = vand.u32 %v192, 4294901760
    %v743 = vsub.f32 %v192, %v742
    %744 = vmatprep.subr.mxu0 %v743
    %v745 = vand.u32 %v191, 4294901760
    %v746 = vsub.f32 %v191, %v745
    %747 = vmatpush1.msra.mxu0 %v746
    %v748 = vand.u32 %v189, 4294901760
    %v749 = vsub.f32 %v189, %v748
    %750 = vmatprep.subr.mxu0 %v749
    %v751 = vand.u32 %v188, 4294901760
    %v752 = vsub.f32 %v188, %v751
    %753 = vmatpush1.msra.mxu0 %v752
    %v754 = vand.u32 %v186, 4294901760
    %v755 = vsub.f32 %v186, %v754
    %756 = vmatprep.subr.mxu0 %v755
    %v757 = vand.u32 %v185, 4294901760
    %v758 = vsub.f32 %v185, %v757
    %759 = vmatpush1.msra.mxu0 %v758
    %v760 = vand.u32 %v183, 4294901760
    %v761 = vsub.f32 %v183, %v760
    %762 = vmatprep.subr.mxu0 %v761
    %v763 = vand.u32 %v182, 4294901760
    %v764 = vsub.f32 %v182, %v763
    %765 = vmatpush1.msra.mxu0 %v764
    %v766 = vand.u32 %v180, 4294901760
    %v767 = vsub.f32 %v180, %v766
    %768 = vmatprep.subr.mxu0 %v767
    %v769 = vand.u32 %v179, 4294901760
    %v770 = vsub.f32 %v179, %v769
    %771 = vmatpush1.msra.mxu0 %v770
    %v772 = vand.u32 %v177, 4294901760
    %v773 = vsub.f32 %v177, %v772
    %774 = vmatprep.subr.mxu0 %v773
    %v775 = vand.u32 %v176, 4294901760
    %v776 = vsub.f32 %v176, %v775
    %777 = vmatpush1.msra.mxu0 %v776
    %v778 = vand.u32 %v174, 4294901760
    %v779 = vsub.f32 %v174, %v778
    %780 = vmatprep.subr.mxu0 %v779
    %v781 = vand.u32 %v173, 4294901760
    %v782 = vsub.f32 %v173, %v781
    %783 = vmatpush1.msra.mxu0 %v782
    %v784 = vand.u32 %v171, 4294901760
    %v785 = vsub.f32 %v171, %v784
    %786 = vmatprep.subr.mxu0 %v785
    %v787 = vand.u32 %v170, 4294901760
    %v788 = vsub.f32 %v170, %v787
    %789 = vmatpush1.msra.mxu0 %v788
    %v790 = vand.u32 %v168, 4294901760
    %v791 = vsub.f32 %v168, %v790
    %792 = vmatprep.subr.mxu0 %v791
    %v793 = vand.u32 %v167, 4294901760
    %v794 = vsub.f32 %v167, %v793
    %795 = vmatpush1.msra.mxu0 %v794
    %796 = vmatprep.subr.mxu0 0.0
    %797 = vmatpush2.msra.mxu0 0.0
    %798 = vmatprep.subr.mxu0 0.0
    %799 = vmatpush2.msra.mxu0 0.0
    %800 = vmatprep.subr.mxu0 0.0
    %801 = vmatpush2.msra.mxu0 0.0
    %802 = vmatprep.subr.mxu0 0.0
    %803 = vmatpush2.msra.mxu0 0.0
    %804 = vmatprep.subr.mxu0 0.0
    %805 = vmatpush2.msra.mxu0 0.0
    %806 = vmatprep.subr.mxu0 0.0
    %807 = vmatpush2.msra.mxu0 0.0
    %808 = vmatprep.subr.mxu0 0.0
    %809 = vmatpush2.msra.mxu0 0.0
    %v810 = vand.u32 %v240, 4294901760
    %v811 = vsub.f32 %v240, %v810
    %812 = vmatprep.subr.mxu0 %v811
    %v813 = vand.u32 %v239, 4294901760
    %v814 = vsub.f32 %v239, %v813
    %815 = vmatpush2.msra.mxu0 %v814
    %v816 = vand.u32 %v237, 4294901760
    %v817 = vsub.f32 %v237, %v816
    %818 = vmatprep.subr.mxu0 %v817
    %v819 = vand.u32 %v236, 4294901760
    %v820 = vsub.f32 %v236, %v819
    %821 = vmatpush2.msra.mxu0 %v820
    %v822 = vand.u32 %v234, 4294901760
    %v823 = vsub.f32 %v234, %v822
    %824 = vmatprep.subr.mxu0 %v823
    %v825 = vand.u32 %v233, 4294901760
    %v826 = vsub.f32 %v233, %v825
    %827 = vmatpush2.msra.mxu0 %v826
    %v828 = vand.u32 %v231, 4294901760
    %v829 = vsub.f32 %v231, %v828
    %830 = vmatprep.subr.mxu0 %v829
    %v831 = vand.u32 %v230, 4294901760
    %v832 = vsub.f32 %v230, %v831
    %833 = vmatpush2.msra.mxu0 %v832
    %v834 = vand.u32 %v228, 4294901760
    %v835 = vsub.f32 %v228, %v834
    %836 = vmatprep.subr.mxu0 %v835
    %v837 = vand.u32 %v227, 4294901760
    %v838 = vsub.f32 %v227, %v837
    %839 = vmatpush2.msra.mxu0 %v838
    %v840 = vand.u32 %v225, 4294901760
    %v841 = vsub.f32 %v225, %v840
    %842 = vmatprep.subr.mxu0 %v841
    %v843 = vand.u32 %v224, 4294901760
    %v844 = vsub.f32 %v224, %v843
    %845 = vmatpush2.msra.mxu0 %v844
    %v846 = vand.u32 %v222, 4294901760
    %v847 = vsub.f32 %v222, %v846
    %848 = vmatprep.subr.mxu0 %v847
    %v849 = vand.u32 %v221, 4294901760
    %v850 = vsub.f32 %v221, %v849
    %851 = vmatpush2.msra.mxu0 %v850
    %v852 = vand.u32 %v219, 4294901760
    %v853 = vsub.f32 %v219, %v852
    %854 = vmatprep.subr.mxu0 %v853
    %v855 = vand.u32 %v218, 4294901760
    %v856 = vsub.f32 %v218, %v855
    %857 = vmatpush2.msra.mxu0 %v856
    %v858 = vand.u32 %v216, 4294901760
    %v859 = vsub.f32 %v216, %v858
    %860 = vmatprep.subr.mxu0 %v859
    %v861 = vand.u32 %v215, 4294901760
    %v862 = vsub.f32 %v215, %v861
    %863 = vmatpush2.msra.mxu0 %v862
    %v864 = vand.u32 %v244, 4294901760
    %v865 = vsub.f32 %v244, %v864
    %866 = vmatprep.mubr.f32.mxu0 %v865
    %v867 = vand.u32 %v165, 4294901760
    %v868 = vsub.f32 %v165, %v867
    %869 = vmatmul.mubr.f32.gmra.mxu0 %v868
    %v870 = vpop.f32.mrf.mxu0
    %v871 = vadd.f32 %v696, %v870
    %v872 = vpop.f32.mrf.mxu0
    %v873 = vadd.f32 %v698, %v872
    %874 = vdwg.mxu0
    %v875 = vand.u32 %v213, 4294901760
    %876 = vmatprep.subr.mxu0 %v875
    %v877 = vand.u32 %v212, 4294901760
    %878 = vmatpush1.msra.mxu0 %v877
    %v879 = vand.u32 %v210, 4294901760
    %880 = vmatprep.subr.mxu0 %v879
    %v881 = vand.u32 %v209, 4294901760
    %882 = vmatpush1.msra.mxu0 %v881
    %v883 = vand.u32 %v207, 4294901760
    %884 = vmatprep.subr.mxu0 %v883
    %v885 = vand.u32 %v206, 4294901760
    %886 = vmatpush1.msra.mxu0 %v885
    %v887 = vand.u32 %v204, 4294901760
    %888 = vmatprep.subr.mxu0 %v887
    %v889 = vand.u32 %v203, 4294901760
    %890 = vmatpush1.msra.mxu0 %v889
    %v891 = vand.u32 %v201, 4294901760
    %892 = vmatprep.subr.mxu0 %v891
    %v893 = vand.u32 %v200, 4294901760
    %894 = vmatpush1.msra.mxu0 %v893
    %v895 = vand.u32 %v198, 4294901760
    %896 = vmatprep.subr.mxu0 %v895
    %v897 = vand.u32 %v197, 4294901760
    %898 = vmatpush1.msra.mxu0 %v897
    %v899 = vand.u32 %v195, 4294901760
    %900 = vmatprep.subr.mxu0 %v899
    %v901 = vand.u32 %v194, 4294901760
    %902 = vmatpush1.msra.mxu0 %v901
    %v903 = vand.u32 %v192, 4294901760
    %904 = vmatprep.subr.mxu0 %v903
    %v905 = vand.u32 %v191, 4294901760
    %906 = vmatpush1.msra.mxu0 %v905
    %v907 = vand.u32 %v189, 4294901760
    %908 = vmatprep.subr.mxu0 %v907
    %v909 = vand.u32 %v188, 4294901760
    %910 = vmatpush1.msra.mxu0 %v909
    %v911 = vand.u32 %v186, 4294901760
    %912 = vmatprep.subr.mxu0 %v911
    %v913 = vand.u32 %v185, 4294901760
    %914 = vmatpush1.msra.mxu0 %v913
    %v915 = vand.u32 %v183, 4294901760
    %916 = vmatprep.subr.mxu0 %v915
    %v917 = vand.u32 %v182, 4294901760
    %918 = vmatpush1.msra.mxu0 %v917
    %v919 = vand.u32 %v180, 4294901760
    %920 = vmatprep.subr.mxu0 %v919
    %v921 = vand.u32 %v179, 4294901760
    %922 = vmatpush1.msra.mxu0 %v921
    %v923 = vand.u32 %v177, 4294901760
    %924 = vmatprep.subr.mxu0 %v923
    %v925 = vand.u32 %v176, 4294901760
    %926 = vmatpush1.msra.mxu0 %v925
    %v927 = vand.u32 %v174, 4294901760
    %928 = vmatprep.subr.mxu0 %v927
    %v929 = vand.u32 %v173, 4294901760
    %930 = vmatpush1.msra.mxu0 %v929
    %v931 = vand.u32 %v171, 4294901760
    %932 = vmatprep.subr.mxu0 %v931
    %v933 = vand.u32 %v170, 4294901760
    %934 = vmatpush1.msra.mxu0 %v933
    %v935 = vand.u32 %v168, 4294901760
    %936 = vmatprep.subr.mxu0 %v935
    %v937 = vand.u32 %v167, 4294901760
    %938 = vmatpush1.msra.mxu0 %v937
    %939 = vmatprep.subr.mxu0 0.0
    %940 = vmatpush2.msra.mxu0 0.0
    %941 = vmatprep.subr.mxu0 0.0
    %942 = vmatpush2.msra.mxu0 0.0
    %943 = vmatprep.subr.mxu0 0.0
    %944 = vmatpush2.msra.mxu0 0.0
    %945 = vmatprep.subr.mxu0 0.0
    %946 = vmatpush2.msra.mxu0 0.0
    %947 = vmatprep.subr.mxu0 0.0
    %948 = vmatpush2.msra.mxu0 0.0
    %949 = vmatprep.subr.mxu0 0.0
    %950 = vmatpush2.msra.mxu0 0.0
    %951 = vmatprep.subr.mxu0 0.0
    %952 = vmatpush2.msra.mxu0 0.0
    %v953 = vand.u32 %v240, 4294901760
    %954 = vmatprep.subr.mxu0 %v953
    %v955 = vand.u32 %v239, 4294901760
    %956 = vmatpush2.msra.mxu0 %v955
    %v957 = vand.u32 %v237, 4294901760
    %958 = vmatprep.subr.mxu0 %v957
    %v959 = vand.u32 %v236, 4294901760
    %960 = vmatpush2.msra.mxu0 %v959
    %v961 = vand.u32 %v234, 4294901760
    %962 = vmatprep.subr.mxu0 %v961
    %v963 = vand.u32 %v233, 4294901760
    %964 = vmatpush2.msra.mxu0 %v963
    %v965 = vand.u32 %v231, 4294901760
    %966 = vmatprep.subr.mxu0 %v965
    %v967 = vand.u32 %v230, 4294901760
    %968 = vmatpush2.msra.mxu0 %v967
    %v969 = vand.u32 %v228, 4294901760
    %970 = vmatprep.subr.mxu0 %v969
    %v971 = vand.u32 %v227, 4294901760
    %972 = vmatpush2.msra.mxu0 %v971
    %v973 = vand.u32 %v225, 4294901760
    %974 = vmatprep.subr.mxu0 %v973
    %v975 = vand.u32 %v224, 4294901760
    %976 = vmatpush2.msra.mxu0 %v975
    %v977 = vand.u32 %v222, 4294901760
    %978 = vmatprep.subr.mxu0 %v977
    %v979 = vand.u32 %v221, 4294901760
    %980 = vmatpush2.msra.mxu0 %v979
    %v981 = vand.u32 %v219, 4294901760
    %982 = vmatprep.subr.mxu0 %v981
    %v983 = vand.u32 %v218, 4294901760
    %984 = vmatpush2.msra.mxu0 %v983
    %v985 = vand.u32 %v216, 4294901760
    %986 = vmatprep.subr.mxu0 %v985
    %v987 = vand.u32 %v215, 4294901760
    %988 = vmatpush2.msra.mxu0 %v987
    %v989 = vand.u32 %v244, 4294901760
    %v990 = vsub.f32 %v244, %v989
    %v991 = vand.u32 %v990, 4294901760
    %992 = vmatprep.mubr.f32.mxu0 %v991
    %v993 = vand.u32 %v165, 4294901760
    %v994 = vsub.f32 %v165, %v993
    %v995 = vand.u32 %v994, 4294901760
    %996 = vmatmul.mubr.f32.gmra.mxu0 %v995
    %v997 = vpop.f32.mrf.mxu0
    %v998 = vadd.f32 %v871, %v997
    %v999 = vpop.f32.mrf.mxu0
    %v1000 = vadd.f32 %v873, %v999
    %1001 = vdwg.mxu0
    %v1002 = vand.u32 %v213, 4294901760
    %v1003 = vsub.f32 %v213, %v1002
    %v1004 = vand.u32 %v1003, 4294901760
    %1005 = vmatprep.subr.mxu0 %v1004
    %v1006 = vand.u32 %v212, 4294901760
    %v1007 = vsub.f32 %v212, %v1006
    %v1008 = vand.u32 %v1007, 4294901760
    %1009 = vmatpush1.msra.mxu0 %v1008
    %v1010 = vand.u32 %v210, 4294901760
    %v1011 = vsub.f32 %v210, %v1010
    %v1012 = vand.u32 %v1011, 4294901760
    %1013 = vmatprep.subr.mxu0 %v1012
    %v1014 = vand.u32 %v209, 4294901760
    %v1015 = vsub.f32 %v209, %v1014
    %v1016 = vand.u32 %v1015, 4294901760
    %1017 = vmatpush1.msra.mxu0 %v1016
    %v1018 = vand.u32 %v207, 4294901760
    %v1019 = vsub.f32 %v207, %v1018
    %v1020 = vand.u32 %v1019, 4294901760
    %1021 = vmatprep.subr.mxu0 %v1020
    %v1022 = vand.u32 %v206, 4294901760
    %v1023 = vsub.f32 %v206, %v1022
    %v1024 = vand.u32 %v1023, 4294901760
    %1025 = vmatpush1.msra.mxu0 %v1024
    %v1026 = vand.u32 %v204, 4294901760
    %v1027 = vsub.f32 %v204, %v1026
    %v1028 = vand.u32 %v1027, 4294901760
    %1029 = vmatprep.subr.mxu0 %v1028
    %v1030 = vand.u32 %v203, 4294901760
    %v1031 = vsub.f32 %v203, %v1030
    %v1032 = vand.u32 %v1031, 4294901760
    %1033 = vmatpush1.msra.mxu0 %v1032
    %v1034 = vand.u32 %v201, 4294901760
    %v1035 = vsub.f32 %v201, %v1034
    %v1036 = vand.u32 %v1035, 4294901760
    %1037 = vmatprep.subr.mxu0 %v1036
    %v1038 = vand.u32 %v200, 4294901760
    %v1039 = vsub.f32 %v200, %v1038
    %v1040 = vand.u32 %v1039, 4294901760
    %1041 = vmatpush1.msra.mxu0 %v1040
    %v1042 = vand.u32 %v198, 4294901760
    %v1043 = vsub.f32 %v198, %v1042
    %v1044 = vand.u32 %v1043, 4294901760
    %1045 = vmatprep.subr.mxu0 %v1044
    %v1046 = vand.u32 %v197, 4294901760
    %v1047 = vsub.f32 %v197, %v1046
    %v1048 = vand.u32 %v1047, 4294901760
    %1049 = vmatpush1.msra.mxu0 %v1048
    %v1050 = vand.u32 %v195, 4294901760
    %v1051 = vsub.f32 %v195, %v1050
    %v1052 = vand.u32 %v1051, 4294901760
    %1053 = vmatprep.subr.mxu0 %v1052
    %v1054 = vand.u32 %v194, 4294901760
    %v1055 = vsub.f32 %v194, %v1054
    %v1056 = vand.u32 %v1055, 4294901760
    %1057 = vmatpush1.msra.mxu0 %v1056
    %v1058 = vand.u32 %v192, 4294901760
    %v1059 = vsub.f32 %v192, %v1058
    %v1060 = vand.u32 %v1059, 4294901760
    %1061 = vmatprep.subr.mxu0 %v1060
    %v1062 = vand.u32 %v191, 4294901760
    %v1063 = vsub.f32 %v191, %v1062
    %v1064 = vand.u32 %v1063, 4294901760
    %1065 = vmatpush1.msra.mxu0 %v1064
    %v1066 = vand.u32 %v189, 4294901760
    %v1067 = vsub.f32 %v189, %v1066
    %v1068 = vand.u32 %v1067, 4294901760
    %1069 = vmatprep.subr.mxu0 %v1068
    %v1070 = vand.u32 %v188, 4294901760
    %v1071 = vsub.f32 %v188, %v1070
    %v1072 = vand.u32 %v1071, 4294901760
    %1073 = vmatpush1.msra.mxu0 %v1072
    %v1074 = vand.u32 %v186, 4294901760
    %v1075 = vsub.f32 %v186, %v1074
    %v1076 = vand.u32 %v1075, 4294901760
    %1077 = vmatprep.subr.mxu0 %v1076
    %v1078 = vand.u32 %v185, 4294901760
    %v1079 = vsub.f32 %v185, %v1078
    %v1080 = vand.u32 %v1079, 4294901760
    %1081 = vmatpush1.msra.mxu0 %v1080
    %v1082 = vand.u32 %v183, 4294901760
    %v1083 = vsub.f32 %v183, %v1082
    %v1084 = vand.u32 %v1083, 4294901760
    %1085 = vmatprep.subr.mxu0 %v1084
    %v1086 = vand.u32 %v182, 4294901760
    %v1087 = vsub.f32 %v182, %v1086
    %v1088 = vand.u32 %v1087, 4294901760
    %1089 = vmatpush1.msra.mxu0 %v1088
    %v1090 = vand.u32 %v180, 4294901760
    %v1091 = vsub.f32 %v180, %v1090
    %v1092 = vand.u32 %v1091, 4294901760
    %1093 = vmatprep.subr.mxu0 %v1092
    %v1094 = vand.u32 %v179, 4294901760
    %v1095 = vsub.f32 %v179, %v1094
    %v1096 = vand.u32 %v1095, 4294901760
    %1097 = vmatpush1.msra.mxu0 %v1096
    %v1098 = vand.u32 %v177, 4294901760
    %v1099 = vsub.f32 %v177, %v1098
    %v1100 = vand.u32 %v1099, 4294901760
    %1101 = vmatprep.subr.mxu0 %v1100
    %v1102 = vand.u32 %v176, 4294901760
    %v1103 = vsub.f32 %v176, %v1102
    %v1104 = vand.u32 %v1103, 4294901760
    %1105 = vmatpush1.msra.mxu0 %v1104
    %v1106 = vand.u32 %v174, 4294901760
    %v1107 = vsub.f32 %v174, %v1106
    %v1108 = vand.u32 %v1107, 4294901760
    %1109 = vmatprep.subr.mxu0 %v1108
    %v1110 = vand.u32 %v173, 4294901760
    %v1111 = vsub.f32 %v173, %v1110
    %v1112 = vand.u32 %v1111, 4294901760
    %1113 = vmatpush1.msra.mxu0 %v1112
    %v1114 = vand.u32 %v171, 4294901760
    %v1115 = vsub.f32 %v171, %v1114
    %v1116 = vand.u32 %v1115, 4294901760
    %1117 = vmatprep.subr.mxu0 %v1116
    %v1118 = vand.u32 %v170, 4294901760
    %v1119 = vsub.f32 %v170, %v1118
    %v1120 = vand.u32 %v1119, 4294901760
    %1121 = vmatpush1.msra.mxu0 %v1120
    %v1122 = vand.u32 %v168, 4294901760
    %v1123 = vsub.f32 %v168, %v1122
    %v1124 = vand.u32 %v1123, 4294901760
    %1125 = vmatprep.subr.mxu0 %v1124
    %v1126 = vand.u32 %v167, 4294901760
    %v1127 = vsub.f32 %v167, %v1126
    %v1128 = vand.u32 %v1127, 4294901760
    %1129 = vmatpush1.msra.mxu0 %v1128
    %1130 = vmatprep.subr.mxu0 0.0
    %1131 = vmatpush2.msra.mxu0 0.0
    %1132 = vmatprep.subr.mxu0 0.0
    %1133 = vmatpush2.msra.mxu0 0.0
    %1134 = vmatprep.subr.mxu0 0.0
    %1135 = vmatpush2.msra.mxu0 0.0
    %1136 = vmatprep.subr.mxu0 0.0
    %1137 = vmatpush2.msra.mxu0 0.0
    %1138 = vmatprep.subr.mxu0 0.0
    %1139 = vmatpush2.msra.mxu0 0.0
    %1140 = vmatprep.subr.mxu0 0.0
    %1141 = vmatpush2.msra.mxu0 0.0
    %1142 = vmatprep.subr.mxu0 0.0
    %1143 = vmatpush2.msra.mxu0 0.0
    %v1144 = vand.u32 %v240, 4294901760
    %v1145 = vsub.f32 %v240, %v1144
    %v1146 = vand.u32 %v1145, 4294901760
    %1147 = vmatprep.subr.mxu0 %v1146
    %v1148 = vand.u32 %v239, 4294901760
    %v1149 = vsub.f32 %v239, %v1148
    %v1150 = vand.u32 %v1149, 4294901760
    %1151 = vmatpush2.msra.mxu0 %v1150
    %v1152 = vand.u32 %v237, 4294901760
    %v1153 = vsub.f32 %v237, %v1152
    %v1154 = vand.u32 %v1153, 4294901760
    %1155 = vmatprep.subr.mxu0 %v1154
    %v1156 = vand.u32 %v236, 4294901760
    %v1157 = vsub.f32 %v236, %v1156
    %v1158 = vand.u32 %v1157, 4294901760
    %1159 = vmatpush2.msra.mxu0 %v1158
    %v1160 = vand.u32 %v234, 4294901760
    %v1161 = vsub.f32 %v234, %v1160
    %v1162 = vand.u32 %v1161, 4294901760
    %1163 = vmatprep.subr.mxu0 %v1162
    %v1164 = vand.u32 %v233, 4294901760
    %v1165 = vsub.f32 %v233, %v1164
    %v1166 = vand.u32 %v1165, 4294901760
    %1167 = vmatpush2.msra.mxu0 %v1166
    %v1168 = vand.u32 %v231, 4294901760
    %v1169 = vsub.f32 %v231, %v1168
    %v1170 = vand.u32 %v1169, 4294901760
    %1171 = vmatprep.subr.mxu0 %v1170
    %v1172 = vand.u32 %v230, 4294901760
    %v1173 = vsub.f32 %v230, %v1172
    %v1174 = vand.u32 %v1173, 4294901760
    %1175 = vmatpush2.msra.mxu0 %v1174
    %v1176 = vand.u32 %v228, 4294901760
    %v1177 = vsub.f32 %v228, %v1176
    %v1178 = vand.u32 %v1177, 4294901760
    %1179 = vmatprep.subr.mxu0 %v1178
    %v1180 = vand.u32 %v227, 4294901760
    %v1181 = vsub.f32 %v227, %v1180
    %v1182 = vand.u32 %v1181, 4294901760
    %1183 = vmatpush2.msra.mxu0 %v1182
    %v1184 = vand.u32 %v225, 4294901760
    %v1185 = vsub.f32 %v225, %v1184
    %v1186 = vand.u32 %v1185, 4294901760
    %1187 = vmatprep.subr.mxu0 %v1186
    %v1188 = vand.u32 %v224, 4294901760
    %v1189 = vsub.f32 %v224, %v1188
    %v1190 = vand.u32 %v1189, 4294901760
    %1191 = vmatpush2.msra.mxu0 %v1190
    %v1192 = vand.u32 %v222, 4294901760
    %v1193 = vsub.f32 %v222, %v1192
    %v1194 = vand.u32 %v1193, 4294901760
    %1195 = vmatprep.subr.mxu0 %v1194
    %v1196 = vand.u32 %v221, 4294901760
    %v1197 = vsub.f32 %v221, %v1196
    %v1198 = vand.u32 %v1197, 4294901760
    %1199 = vmatpush2.msra.mxu0 %v1198
    %v1200 = vand.u32 %v219, 4294901760
    %v1201 = vsub.f32 %v219, %v1200
    %v1202 = vand.u32 %v1201, 4294901760
    %1203 = vmatprep.subr.mxu0 %v1202
    %v1204 = vand.u32 %v218, 4294901760
    %v1205 = vsub.f32 %v218, %v1204
    %v1206 = vand.u32 %v1205, 4294901760
    %1207 = vmatpush2.msra.mxu0 %v1206
    %v1208 = vand.u32 %v216, 4294901760
    %v1209 = vsub.f32 %v216, %v1208
    %v1210 = vand.u32 %v1209, 4294901760
    %1211 = vmatprep.subr.mxu0 %v1210
    %v1212 = vand.u32 %v215, 4294901760
    %v1213 = vsub.f32 %v215, %v1212
    %v1214 = vand.u32 %v1213, 4294901760
    %1215 = vmatpush2.msra.mxu0 %v1214
    %v1216 = vand.u32 %v244, 4294901760
    %1217 = vmatprep.mubr.f32.mxu0 %v1216
    %v1218 = vand.u32 %v165, 4294901760
    %1219 = vmatmul.mubr.f32.gmra.mxu0 %v1218
    %v1220 = vpop.f32.mrf.mxu0
    %v1221 = vadd.f32 %v998, %v1220
    %v1222 = vpop.f32.mrf.mxu0
    %v1223 = vadd.f32 %v1000, %v1222
    %1224 = vdwg.mxu0
    %v1225 = vand.u32 %v213, 4294901760
    %1226 = vmatprep.subr.mxu0 %v1225
    %v1227 = vand.u32 %v212, 4294901760
    %1228 = vmatpush1.msra.mxu0 %v1227
    %v1229 = vand.u32 %v210, 4294901760
    %1230 = vmatprep.subr.mxu0 %v1229
    %v1231 = vand.u32 %v209, 4294901760
    %1232 = vmatpush1.msra.mxu0 %v1231
    %v1233 = vand.u32 %v207, 4294901760
    %1234 = vmatprep.subr.mxu0 %v1233
    %v1235 = vand.u32 %v206, 4294901760
    %1236 = vmatpush1.msra.mxu0 %v1235
    %v1237 = vand.u32 %v204, 4294901760
    %1238 = vmatprep.subr.mxu0 %v1237
    %v1239 = vand.u32 %v203, 4294901760
    %1240 = vmatpush1.msra.mxu0 %v1239
    %v1241 = vand.u32 %v201, 4294901760
    %1242 = vmatprep.subr.mxu0 %v1241
    %v1243 = vand.u32 %v200, 4294901760
    %1244 = vmatpush1.msra.mxu0 %v1243
    %v1245 = vand.u32 %v198, 4294901760
    %1246 = vmatprep.subr.mxu0 %v1245
    %v1247 = vand.u32 %v197, 4294901760
    %1248 = vmatpush1.msra.mxu0 %v1247
    %v1249 = vand.u32 %v195, 4294901760
    %1250 = vmatprep.subr.mxu0 %v1249
    %v1251 = vand.u32 %v194, 4294901760
    %1252 = vmatpush1.msra.mxu0 %v1251
    %v1253 = vand.u32 %v192, 4294901760
    %1254 = vmatprep.subr.mxu0 %v1253
    %v1255 = vand.u32 %v191, 4294901760
    %1256 = vmatpush1.msra.mxu0 %v1255
    %v1257 = vand.u32 %v189, 4294901760
    %1258 = vmatprep.subr.mxu0 %v1257
    %v1259 = vand.u32 %v188, 4294901760
    %1260 = vmatpush1.msra.mxu0 %v1259
    %v1261 = vand.u32 %v186, 4294901760
    %1262 = vmatprep.subr.mxu0 %v1261
    %v1263 = vand.u32 %v185, 4294901760
    %1264 = vmatpush1.msra.mxu0 %v1263
    %v1265 = vand.u32 %v183, 4294901760
    %1266 = vmatprep.subr.mxu0 %v1265
    %v1267 = vand.u32 %v182, 4294901760
    %1268 = vmatpush1.msra.mxu0 %v1267
    %v1269 = vand.u32 %v180, 4294901760
    %1270 = vmatprep.subr.mxu0 %v1269
    %v1271 = vand.u32 %v179, 4294901760
    %1272 = vmatpush1.msra.mxu0 %v1271
    %v1273 = vand.u32 %v177, 4294901760
    %1274 = vmatprep.subr.mxu0 %v1273
    %v1275 = vand.u32 %v176, 4294901760
    %1276 = vmatpush1.msra.mxu0 %v1275
    %v1277 = vand.u32 %v174, 4294901760
    %1278 = vmatprep.subr.mxu0 %v1277
    %v1279 = vand.u32 %v173, 4294901760
    %1280 = vmatpush1.msra.mxu0 %v1279
    %v1281 = vand.u32 %v171, 4294901760
    %1282 = vmatprep.subr.mxu0 %v1281
    %v1283 = vand.u32 %v170, 4294901760
    %1284 = vmatpush1.msra.mxu0 %v1283
    %v1285 = vand.u32 %v168, 4294901760
    %1286 = vmatprep.subr.mxu0 %v1285
    %v1287 = vand.u32 %v167, 4294901760
    %1288 = vmatpush1.msra.mxu0 %v1287
    %1289 = vmatprep.subr.mxu0 0.0
    %1290 = vmatpush2.msra.mxu0 0.0
    %1291 = vmatprep.subr.mxu0 0.0
    %1292 = vmatpush2.msra.mxu0 0.0
    %1293 = vmatprep.subr.mxu0 0.0
    %1294 = vmatpush2.msra.mxu0 0.0
    %1295 = vmatprep.subr.mxu0 0.0
    %1296 = vmatpush2.msra.mxu0 0.0
    %1297 = vmatprep.subr.mxu0 0.0
    %1298 = vmatpush2.msra.mxu0 0.0
    %1299 = vmatprep.subr.mxu0 0.0
    %1300 = vmatpush2.msra.mxu0 0.0
    %1301 = vmatprep.subr.mxu0 0.0
    %1302 = vmatpush2.msra.mxu0 0.0
    %v1303 = vand.u32 %v240, 4294901760
    %1304 = vmatprep.subr.mxu0 %v1303
    %v1305 = vand.u32 %v239, 4294901760
    %1306 = vmatpush2.msra.mxu0 %v1305
    %v1307 = vand.u32 %v237, 4294901760
    %1308 = vmatprep.subr.mxu0 %v1307
    %v1309 = vand.u32 %v236, 4294901760
    %1310 = vmatpush2.msra.mxu0 %v1309
    %v1311 = vand.u32 %v234, 4294901760
    %1312 = vmatprep.subr.mxu0 %v1311
    %v1313 = vand.u32 %v233, 4294901760
    %1314 = vmatpush2.msra.mxu0 %v1313
    %v1315 = vand.u32 %v231, 4294901760
    %1316 = vmatprep.subr.mxu0 %v1315
    %v1317 = vand.u32 %v230, 4294901760
    %1318 = vmatpush2.msra.mxu0 %v1317
    %v1319 = vand.u32 %v228, 4294901760
    %1320 = vmatprep.subr.mxu0 %v1319
    %v1321 = vand.u32 %v227, 4294901760
    %1322 = vmatpush2.msra.mxu0 %v1321
    %v1323 = vand.u32 %v225, 4294901760
    %1324 = vmatprep.subr.mxu0 %v1323
    %v1325 = vand.u32 %v224, 4294901760
    %1326 = vmatpush2.msra.mxu0 %v1325
    %v1327 = vand.u32 %v222, 4294901760
    %1328 = vmatprep.subr.mxu0 %v1327
    %v1329 = vand.u32 %v221, 4294901760
    %1330 = vmatpush2.msra.mxu0 %v1329
    %v1331 = vand.u32 %v219, 4294901760
    %1332 = vmatprep.subr.mxu0 %v1331
    %v1333 = vand.u32 %v218, 4294901760
    %1334 = vmatpush2.msra.mxu0 %v1333
    %v1335 = vand.u32 %v216, 4294901760
    %1336 = vmatprep.subr.mxu0 %v1335
    %v1337 = vand.u32 %v215, 4294901760
    %1338 = vmatpush2.msra.mxu0 %v1337
    %v1339 = vand.u32 %v244, 4294901760
    %1340 = vmatprep.mubr.f32.mxu0 %v1339
    %v1341 = vand.u32 %v165, 4294901760
    %1342 = vmatmul.mubr.f32.gmra.mxu0 %v1341
    %v1343 = vpop.f32.mrf.mxu0
    %v1344 = vadd.f32 %v1221, %v1343
    %v1345 = vpop.f32.mrf.mxu0
    %v1346 = vadd.f32 %v1223, %v1345
    %1347 = vdwg.mxu0
    %1348 = vmatprep.subr.mxu0 0.0
    %v1349 = vand.u32 %v214, 4294901760
    %1350 = vmatpush1.msra.mxu0 %v1349
    %1351 = vmatprep.subr.mxu0 0.0
    %v1352 = vand.u32 %v211, 4294901760
    %1353 = vmatpush1.msra.mxu0 %v1352
    %1354 = vmatprep.subr.mxu0 0.0
    %v1355 = vand.u32 %v208, 4294901760
    %1356 = vmatpush1.msra.mxu0 %v1355
    %1357 = vmatprep.subr.mxu0 0.0
    %v1358 = vand.u32 %v205, 4294901760
    %1359 = vmatpush1.msra.mxu0 %v1358
    %1360 = vmatprep.subr.mxu0 0.0
    %v1361 = vand.u32 %v202, 4294901760
    %1362 = vmatpush1.msra.mxu0 %v1361
    %1363 = vmatprep.subr.mxu0 0.0
    %v1364 = vand.u32 %v199, 4294901760
    %1365 = vmatpush1.msra.mxu0 %v1364
    %1366 = vmatprep.subr.mxu0 0.0
    %v1367 = vand.u32 %v196, 4294901760
    %1368 = vmatpush1.msra.mxu0 %v1367
    %1369 = vmatprep.subr.mxu0 0.0
    %v1370 = vand.u32 %v193, 4294901760
    %1371 = vmatpush1.msra.mxu0 %v1370
    %1372 = vmatprep.subr.mxu0 0.0
    %v1373 = vand.u32 %v190, 4294901760
    %1374 = vmatpush1.msra.mxu0 %v1373
    %1375 = vmatprep.subr.mxu0 0.0
    %v1376 = vand.u32 %v187, 4294901760
    %1377 = vmatpush1.msra.mxu0 %v1376
    %1378 = vmatprep.subr.mxu0 0.0
    %v1379 = vand.u32 %v184, 4294901760
    %1380 = vmatpush1.msra.mxu0 %v1379
    %1381 = vmatprep.subr.mxu0 0.0
    %v1382 = vand.u32 %v181, 4294901760
    %1383 = vmatpush1.msra.mxu0 %v1382
    %1384 = vmatprep.subr.mxu0 0.0
    %v1385 = vand.u32 %v178, 4294901760
    %1386 = vmatpush1.msra.mxu0 %v1385
    %1387 = vmatprep.subr.mxu0 0.0
    %v1388 = vand.u32 %v175, 4294901760
    %1389 = vmatpush1.msra.mxu0 %v1388
    %1390 = vmatprep.subr.mxu0 0.0
    %v1391 = vand.u32 %v172, 4294901760
    %1392 = vmatpush1.msra.mxu0 %v1391
    %1393 = vmatprep.subr.mxu0 0.0
    %v1394 = vand.u32 %v169, 4294901760
    %1395 = vmatpush1.msra.mxu0 %v1394
    %1396 = vmatprep.subr.mxu0 0.0
    %1397 = vmatpush2.msra.mxu0 0.0
    %1398 = vmatprep.subr.mxu0 0.0
    %1399 = vmatpush2.msra.mxu0 0.0
    %1400 = vmatprep.subr.mxu0 0.0
    %1401 = vmatpush2.msra.mxu0 0.0
    %1402 = vmatprep.subr.mxu0 0.0
    %1403 = vmatpush2.msra.mxu0 0.0
    %1404 = vmatprep.subr.mxu0 0.0
    %1405 = vmatpush2.msra.mxu0 0.0
    %1406 = vmatprep.subr.mxu0 0.0
    %1407 = vmatpush2.msra.mxu0 0.0
    %1408 = vmatprep.subr.mxu0 0.0
    %1409 = vmatpush2.msra.mxu0 0.0
    %1410 = vmatprep.subr.mxu0 0.0
    %v1411 = vand.u32 %v241, 4294901760
    %1412 = vmatpush2.msra.mxu0 %v1411
    %1413 = vmatprep.subr.mxu0 0.0
    %v1414 = vand.u32 %v238, 4294901760
    %1415 = vmatpush2.msra.mxu0 %v1414
    %1416 = vmatprep.subr.mxu0 0.0
    %v1417 = vand.u32 %v235, 4294901760
    %1418 = vmatpush2.msra.mxu0 %v1417
    %1419 = vmatprep.subr.mxu0 0.0
    %v1420 = vand.u32 %v232, 4294901760
    %1421 = vmatpush2.msra.mxu0 %v1420
    %1422 = vmatprep.subr.mxu0 0.0
    %v1423 = vand.u32 %v229, 4294901760
    %1424 = vmatpush2.msra.mxu0 %v1423
    %1425 = vmatprep.subr.mxu0 0.0
    %v1426 = vand.u32 %v226, 4294901760
    %1427 = vmatpush2.msra.mxu0 %v1426
    %1428 = vmatprep.subr.mxu0 0.0
    %v1429 = vand.u32 %v223, 4294901760
    %1430 = vmatpush2.msra.mxu0 %v1429
    %1431 = vmatprep.subr.mxu0 0.0
    %v1432 = vand.u32 %v220, 4294901760
    %1433 = vmatpush2.msra.mxu0 %v1432
    %1434 = vmatprep.subr.mxu0 0.0
    %v1435 = vand.u32 %v217, 4294901760
    %1436 = vmatpush2.msra.mxu0 %v1435
    %v1437 = vand.u32 %v244, 4294901760
    %v1438 = vsub.f32 %v244, %v1437
    %v1439 = vand.u32 %v1438, 4294901760
    %v1440 = vsub.f32 %v1438, %v1439
    %v1441 = vand.u32 %v1440, 4294901760
    %1442 = vmatprep.mubr.f32.mxu0 %v1441
    %v1443 = vand.u32 %v165, 4294901760
    %v1444 = vsub.f32 %v165, %v1443
    %v1445 = vand.u32 %v1444, 4294901760
    %v1446 = vsub.f32 %v1444, %v1445
    %v1447 = vand.u32 %v1446, 4294901760
    %1448 = vmatmul.mubr.f32.gmra.mxu0 %v1447
    %v1449 = vpop.f32.mrf.mxu0
    %v1450 = vadd.f32 0.0, %v1449
    %v1451 = vpop.f32.mrf.mxu0
    %1452 = vdwg.mxu0
    %1453 = vmatprep.subr.mxu0 0.0
    %v1454 = vand.u32 %v214, 4294901760
    %v1455 = vsub.f32 %v214, %v1454
    %v1456 = vand.u32 %v1455, 4294901760
    %v1457 = vsub.f32 %v1455, %v1456
    %v1458 = vand.u32 %v1457, 4294901760
    %1459 = vmatpush1.msra.mxu0 %v1458
    %1460 = vmatprep.subr.mxu0 0.0
    %v1461 = vand.u32 %v211, 4294901760
    %v1462 = vsub.f32 %v211, %v1461
    %v1463 = vand.u32 %v1462, 4294901760
    %v1464 = vsub.f32 %v1462, %v1463
    %v1465 = vand.u32 %v1464, 4294901760
    %1466 = vmatpush1.msra.mxu0 %v1465
    %1467 = vmatprep.subr.mxu0 0.0
    %v1468 = vand.u32 %v208, 4294901760
    %v1469 = vsub.f32 %v208, %v1468
    %v1470 = vand.u32 %v1469, 4294901760
    %v1471 = vsub.f32 %v1469, %v1470
    %v1472 = vand.u32 %v1471, 4294901760
    %1473 = vmatpush1.msra.mxu0 %v1472
    %1474 = vmatprep.subr.mxu0 0.0
    %v1475 = vand.u32 %v205, 4294901760
    %v1476 = vsub.f32 %v205, %v1475
    %v1477 = vand.u32 %v1476, 4294901760
    %v1478 = vsub.f32 %v1476, %v1477
    %v1479 = vand.u32 %v1478, 4294901760
    %1480 = vmatpush1.msra.mxu0 %v1479
    %1481 = vmatprep.subr.mxu0 0.0
    %v1482 = vand.u32 %v202, 4294901760
    %v1483 = vsub.f32 %v202, %v1482
    %v1484 = vand.u32 %v1483, 4294901760
    %v1485 = vsub.f32 %v1483, %v1484
    %v1486 = vand.u32 %v1485, 4294901760
    %1487 = vmatpush1.msra.mxu0 %v1486
    %1488 = vmatprep.subr.mxu0 0.0
    %v1489 = vand.u32 %v199, 4294901760
    %v1490 = vsub.f32 %v199, %v1489
    %v1491 = vand.u32 %v1490, 4294901760
    %v1492 = vsub.f32 %v1490, %v1491
    %v1493 = vand.u32 %v1492, 4294901760
    %1494 = vmatpush1.msra.mxu0 %v1493
    %1495 = vmatprep.subr.mxu0 0.0
    %v1496 = vand.u32 %v196, 4294901760
    %v1497 = vsub.f32 %v196, %v1496
    %v1498 = vand.u32 %v1497, 4294901760
    %v1499 = vsub.f32 %v1497, %v1498
    %v1500 = vand.u32 %v1499, 4294901760
    %1501 = vmatpush1.msra.mxu0 %v1500
    %1502 = vmatprep.subr.mxu0 0.0
    %v1503 = vand.u32 %v193, 4294901760
    %v1504 = vsub.f32 %v193, %v1503
    %v1505 = vand.u32 %v1504, 4294901760
    %v1506 = vsub.f32 %v1504, %v1505
    %v1507 = vand.u32 %v1506, 4294901760
    %1508 = vmatpush1.msra.mxu0 %v1507
    %1509 = vmatprep.subr.mxu0 0.0
    %v1510 = vand.u32 %v190, 4294901760
    %v1511 = vsub.f32 %v190, %v1510
    %v1512 = vand.u32 %v1511, 4294901760
    %v1513 = vsub.f32 %v1511, %v1512
    %v1514 = vand.u32 %v1513, 4294901760
    %1515 = vmatpush1.msra.mxu0 %v1514
    %1516 = vmatprep.subr.mxu0 0.0
    %v1517 = vand.u32 %v187, 4294901760
    %v1518 = vsub.f32 %v187, %v1517
    %v1519 = vand.u32 %v1518, 4294901760
    %v1520 = vsub.f32 %v1518, %v1519
    %v1521 = vand.u32 %v1520, 4294901760
    %1522 = vmatpush1.msra.mxu0 %v1521
    %1523 = vmatprep.subr.mxu0 0.0
    %v1524 = vand.u32 %v184, 4294901760
    %v1525 = vsub.f32 %v184, %v1524
    %v1526 = vand.u32 %v1525, 4294901760
    %v1527 = vsub.f32 %v1525, %v1526
    %v1528 = vand.u32 %v1527, 4294901760
    %1529 = vmatpush1.msra.mxu0 %v1528
    %1530 = vmatprep.subr.mxu0 0.0
    %v1531 = vand.u32 %v181, 4294901760
    %v1532 = vsub.f32 %v181, %v1531
    %v1533 = vand.u32 %v1532, 4294901760
    %v1534 = vsub.f32 %v1532, %v1533
    %v1535 = vand.u32 %v1534, 4294901760
    %1536 = vmatpush1.msra.mxu0 %v1535
    %1537 = vmatprep.subr.mxu0 0.0
    %v1538 = vand.u32 %v178, 4294901760
    %v1539 = vsub.f32 %v178, %v1538
    %v1540 = vand.u32 %v1539, 4294901760
    %v1541 = vsub.f32 %v1539, %v1540
    %v1542 = vand.u32 %v1541, 4294901760
    %1543 = vmatpush1.msra.mxu0 %v1542
    %1544 = vmatprep.subr.mxu0 0.0
    %v1545 = vand.u32 %v175, 4294901760
    %v1546 = vsub.f32 %v175, %v1545
    %v1547 = vand.u32 %v1546, 4294901760
    %v1548 = vsub.f32 %v1546, %v1547
    %v1549 = vand.u32 %v1548, 4294901760
    %1550 = vmatpush1.msra.mxu0 %v1549
    %1551 = vmatprep.subr.mxu0 0.0
    %v1552 = vand.u32 %v172, 4294901760
    %v1553 = vsub.f32 %v172, %v1552
    %v1554 = vand.u32 %v1553, 4294901760
    %v1555 = vsub.f32 %v1553, %v1554
    %v1556 = vand.u32 %v1555, 4294901760
    %1557 = vmatpush1.msra.mxu0 %v1556
    %1558 = vmatprep.subr.mxu0 0.0
    %v1559 = vand.u32 %v169, 4294901760
    %v1560 = vsub.f32 %v169, %v1559
    %v1561 = vand.u32 %v1560, 4294901760
    %v1562 = vsub.f32 %v1560, %v1561
    %v1563 = vand.u32 %v1562, 4294901760
    %1564 = vmatpush1.msra.mxu0 %v1563
    %1565 = vmatprep.subr.mxu0 0.0
    %1566 = vmatpush2.msra.mxu0 0.0
    %1567 = vmatprep.subr.mxu0 0.0
    %1568 = vmatpush2.msra.mxu0 0.0
    %1569 = vmatprep.subr.mxu0 0.0
    %1570 = vmatpush2.msra.mxu0 0.0
    %1571 = vmatprep.subr.mxu0 0.0
    %1572 = vmatpush2.msra.mxu0 0.0
    %1573 = vmatprep.subr.mxu0 0.0
    %1574 = vmatpush2.msra.mxu0 0.0
    %1575 = vmatprep.subr.mxu0 0.0
    %1576 = vmatpush2.msra.mxu0 0.0
    %1577 = vmatprep.subr.mxu0 0.0
    %1578 = vmatpush2.msra.mxu0 0.0
    %1579 = vmatprep.subr.mxu0 0.0
    %v1580 = vand.u32 %v241, 4294901760
    %v1581 = vsub.f32 %v241, %v1580
    %v1582 = vand.u32 %v1581, 4294901760
    %v1583 = vsub.f32 %v1581, %v1582
    %v1584 = vand.u32 %v1583, 4294901760
    %1585 = vmatpush2.msra.mxu0 %v1584
    %1586 = vmatprep.subr.mxu0 0.0
    %v1587 = vand.u32 %v238, 4294901760
    %v1588 = vsub.f32 %v238, %v1587
    %v1589 = vand.u32 %v1588, 4294901760
    %v1590 = vsub.f32 %v1588, %v1589
    %v1591 = vand.u32 %v1590, 4294901760
    %1592 = vmatpush2.msra.mxu0 %v1591
    %1593 = vmatprep.subr.mxu0 0.0
    %v1594 = vand.u32 %v235, 4294901760
    %v1595 = vsub.f32 %v235, %v1594
    %v1596 = vand.u32 %v1595, 4294901760
    %v1597 = vsub.f32 %v1595, %v1596
    %v1598 = vand.u32 %v1597, 4294901760
    %1599 = vmatpush2.msra.mxu0 %v1598
    %1600 = vmatprep.subr.mxu0 0.0
    %v1601 = vand.u32 %v232, 4294901760
    %v1602 = vsub.f32 %v232, %v1601
    %v1603 = vand.u32 %v1602, 4294901760
    %v1604 = vsub.f32 %v1602, %v1603
    %v1605 = vand.u32 %v1604, 4294901760
    %1606 = vmatpush2.msra.mxu0 %v1605
    %1607 = vmatprep.subr.mxu0 0.0
    %v1608 = vand.u32 %v229, 4294901760
    %v1609 = vsub.f32 %v229, %v1608
    %v1610 = vand.u32 %v1609, 4294901760
    %v1611 = vsub.f32 %v1609, %v1610
    %v1612 = vand.u32 %v1611, 4294901760
    %1613 = vmatpush2.msra.mxu0 %v1612
    %1614 = vmatprep.subr.mxu0 0.0
    %v1615 = vand.u32 %v226, 4294901760
    %v1616 = vsub.f32 %v226, %v1615
    %v1617 = vand.u32 %v1616, 4294901760
    %v1618 = vsub.f32 %v1616, %v1617
    %v1619 = vand.u32 %v1618, 4294901760
    %1620 = vmatpush2.msra.mxu0 %v1619
    %1621 = vmatprep.subr.mxu0 0.0
    %v1622 = vand.u32 %v223, 4294901760
    %v1623 = vsub.f32 %v223, %v1622
    %v1624 = vand.u32 %v1623, 4294901760
    %v1625 = vsub.f32 %v1623, %v1624
    %v1626 = vand.u32 %v1625, 4294901760
    %1627 = vmatpush2.msra.mxu0 %v1626
    %1628 = vmatprep.subr.mxu0 0.0
    %v1629 = vand.u32 %v220, 4294901760
    %v1630 = vsub.f32 %v220, %v1629
    %v1631 = vand.u32 %v1630, 4294901760
    %v1632 = vsub.f32 %v1630, %v1631
    %v1633 = vand.u32 %v1632, 4294901760
    %1634 = vmatpush2.msra.mxu0 %v1633
    %1635 = vmatprep.subr.mxu0 0.0
    %v1636 = vand.u32 %v217, 4294901760
    %v1637 = vsub.f32 %v217, %v1636
    %v1638 = vand.u32 %v1637, 4294901760
    %v1639 = vsub.f32 %v1637, %v1638
    %v1640 = vand.u32 %v1639, 4294901760
    %1641 = vmatpush2.msra.mxu0 %v1640
    %v1642 = vand.u32 %v244, 4294901760
    %1643 = vmatprep.mubr.f32.mxu0 %v1642
    %v1644 = vand.u32 %v165, 4294901760
    %1645 = vmatmul.mubr.f32.gmra.mxu0 %v1644
    %v1646 = vpop.f32.mrf.mxu0
    %v1647 = vadd.f32 %v1450, %v1646
    %v1648 = vpop.f32.mrf.mxu0
    %1649 = vdwg.mxu0
    %1650 = vmatprep.subr.mxu0 0.0
    %v1651 = vand.u32 %v214, 4294901760
    %v1652 = vsub.f32 %v214, %v1651
    %1653 = vmatpush1.msra.mxu0 %v1652
    %1654 = vmatprep.subr.mxu0 0.0
    %v1655 = vand.u32 %v211, 4294901760
    %v1656 = vsub.f32 %v211, %v1655
    %1657 = vmatpush1.msra.mxu0 %v1656
    %1658 = vmatprep.subr.mxu0 0.0
    %v1659 = vand.u32 %v208, 4294901760
    %v1660 = vsub.f32 %v208, %v1659
    %1661 = vmatpush1.msra.mxu0 %v1660
    %1662 = vmatprep.subr.mxu0 0.0
    %v1663 = vand.u32 %v205, 4294901760
    %v1664 = vsub.f32 %v205, %v1663
    %1665 = vmatpush1.msra.mxu0 %v1664
    %1666 = vmatprep.subr.mxu0 0.0
    %v1667 = vand.u32 %v202, 4294901760
    %v1668 = vsub.f32 %v202, %v1667
    %1669 = vmatpush1.msra.mxu0 %v1668
    %1670 = vmatprep.subr.mxu0 0.0
    %v1671 = vand.u32 %v199, 4294901760
    %v1672 = vsub.f32 %v199, %v1671
    %1673 = vmatpush1.msra.mxu0 %v1672
    %1674 = vmatprep.subr.mxu0 0.0
    %v1675 = vand.u32 %v196, 4294901760
    %v1676 = vsub.f32 %v196, %v1675
    %1677 = vmatpush1.msra.mxu0 %v1676
    %1678 = vmatprep.subr.mxu0 0.0
    %v1679 = vand.u32 %v193, 4294901760
    %v1680 = vsub.f32 %v193, %v1679
    %1681 = vmatpush1.msra.mxu0 %v1680
    %1682 = vmatprep.subr.mxu0 0.0
    %v1683 = vand.u32 %v190, 4294901760
    %v1684 = vsub.f32 %v190, %v1683
    %1685 = vmatpush1.msra.mxu0 %v1684
    %1686 = vmatprep.subr.mxu0 0.0
    %v1687 = vand.u32 %v187, 4294901760
    %v1688 = vsub.f32 %v187, %v1687
    %1689 = vmatpush1.msra.mxu0 %v1688
    %1690 = vmatprep.subr.mxu0 0.0
    %v1691 = vand.u32 %v184, 4294901760
    %v1692 = vsub.f32 %v184, %v1691
    %1693 = vmatpush1.msra.mxu0 %v1692
    %1694 = vmatprep.subr.mxu0 0.0
    %v1695 = vand.u32 %v181, 4294901760
    %v1696 = vsub.f32 %v181, %v1695
    %1697 = vmatpush1.msra.mxu0 %v1696
    %1698 = vmatprep.subr.mxu0 0.0
    %v1699 = vand.u32 %v178, 4294901760
    %v1700 = vsub.f32 %v178, %v1699
    %1701 = vmatpush1.msra.mxu0 %v1700
    %1702 = vmatprep.subr.mxu0 0.0
    %v1703 = vand.u32 %v175, 4294901760
    %v1704 = vsub.f32 %v175, %v1703
    %1705 = vmatpush1.msra.mxu0 %v1704
    %1706 = vmatprep.subr.mxu0 0.0
    %v1707 = vand.u32 %v172, 4294901760
    %v1708 = vsub.f32 %v172, %v1707
    %1709 = vmatpush1.msra.mxu0 %v1708
    %1710 = vmatprep.subr.mxu0 0.0
    %v1711 = vand.u32 %v169, 4294901760
    %v1712 = vsub.f32 %v169, %v1711
    %1713 = vmatpush1.msra.mxu0 %v1712
    %1714 = vmatprep.subr.mxu0 0.0
    %1715 = vmatpush2.msra.mxu0 0.0
    %1716 = vmatprep.subr.mxu0 0.0
    %1717 = vmatpush2.msra.mxu0 0.0
    %1718 = vmatprep.subr.mxu0 0.0
    %1719 = vmatpush2.msra.mxu0 0.0
    %1720 = vmatprep.subr.mxu0 0.0
    %1721 = vmatpush2.msra.mxu0 0.0
    %1722 = vmatprep.subr.mxu0 0.0
    %1723 = vmatpush2.msra.mxu0 0.0
    %1724 = vmatprep.subr.mxu0 0.0
    %1725 = vmatpush2.msra.mxu0 0.0
    %1726 = vmatprep.subr.mxu0 0.0
    %1727 = vmatpush2.msra.mxu0 0.0
    %1728 = vmatprep.subr.mxu0 0.0
    %v1729 = vand.u32 %v241, 4294901760
    %v1730 = vsub.f32 %v241, %v1729
    %1731 = vmatpush2.msra.mxu0 %v1730
    %1732 = vmatprep.subr.mxu0 0.0
    %v1733 = vand.u32 %v238, 4294901760
    %v1734 = vsub.f32 %v238, %v1733
    %1735 = vmatpush2.msra.mxu0 %v1734
    %1736 = vmatprep.subr.mxu0 0.0
    %v1737 = vand.u32 %v235, 4294901760
    %v1738 = vsub.f32 %v235, %v1737
    %1739 = vmatpush2.msra.mxu0 %v1738
    %1740 = vmatprep.subr.mxu0 0.0
    %v1741 = vand.u32 %v232, 4294901760
    %v1742 = vsub.f32 %v232, %v1741
    %1743 = vmatpush2.msra.mxu0 %v1742
    %1744 = vmatprep.subr.mxu0 0.0
    %v1745 = vand.u32 %v229, 4294901760
    %v1746 = vsub.f32 %v229, %v1745
    %1747 = vmatpush2.msra.mxu0 %v1746
    %1748 = vmatprep.subr.mxu0 0.0
    %v1749 = vand.u32 %v226, 4294901760
    %v1750 = vsub.f32 %v226, %v1749
    %1751 = vmatpush2.msra.mxu0 %v1750
    %1752 = vmatprep.subr.mxu0 0.0
    %v1753 = vand.u32 %v223, 4294901760
    %v1754 = vsub.f32 %v223, %v1753
    %1755 = vmatpush2.msra.mxu0 %v1754
    %1756 = vmatprep.subr.mxu0 0.0
    %v1757 = vand.u32 %v220, 4294901760
    %v1758 = vsub.f32 %v220, %v1757
    %1759 = vmatpush2.msra.mxu0 %v1758
    %1760 = vmatprep.subr.mxu0 0.0
    %v1761 = vand.u32 %v217, 4294901760
    %v1762 = vsub.f32 %v217, %v1761
    %1763 = vmatpush2.msra.mxu0 %v1762
    %v1764 = vand.u32 %v244, 4294901760
    %v1765 = vsub.f32 %v244, %v1764
    %1766 = vmatprep.mubr.f32.mxu0 %v1765
    %v1767 = vand.u32 %v165, 4294901760
    %v1768 = vsub.f32 %v165, %v1767
    %1769 = vmatmul.mubr.f32.gmra.mxu0 %v1768
    %v1770 = vpop.f32.mrf.mxu0
    %v1771 = vadd.f32 %v1647, %v1770
    %v1772 = vpop.f32.mrf.mxu0
    %1773 = vdwg.mxu0
    %1774 = vmatprep.subr.mxu0 0.0
    %v1775 = vand.u32 %v214, 4294901760
    %1776 = vmatpush1.msra.mxu0 %v1775
    %1777 = vmatprep.subr.mxu0 0.0
    %v1778 = vand.u32 %v211, 4294901760
    %1779 = vmatpush1.msra.mxu0 %v1778
    %1780 = vmatprep.subr.mxu0 0.0
    %v1781 = vand.u32 %v208, 4294901760
    %1782 = vmatpush1.msra.mxu0 %v1781
    %1783 = vmatprep.subr.mxu0 0.0
    %v1784 = vand.u32 %v205, 4294901760
    %1785 = vmatpush1.msra.mxu0 %v1784
    %1786 = vmatprep.subr.mxu0 0.0
    %v1787 = vand.u32 %v202, 4294901760
    %1788 = vmatpush1.msra.mxu0 %v1787
    %1789 = vmatprep.subr.mxu0 0.0
    %v1790 = vand.u32 %v199, 4294901760
    %1791 = vmatpush1.msra.mxu0 %v1790
    %1792 = vmatprep.subr.mxu0 0.0
    %v1793 = vand.u32 %v196, 4294901760
    %1794 = vmatpush1.msra.mxu0 %v1793
    %1795 = vmatprep.subr.mxu0 0.0
    %v1796 = vand.u32 %v193, 4294901760
    %1797 = vmatpush1.msra.mxu0 %v1796
    %1798 = vmatprep.subr.mxu0 0.0
    %v1799 = vand.u32 %v190, 4294901760
    %1800 = vmatpush1.msra.mxu0 %v1799
    %1801 = vmatprep.subr.mxu0 0.0
    %v1802 = vand.u32 %v187, 4294901760
    %1803 = vmatpush1.msra.mxu0 %v1802
    %1804 = vmatprep.subr.mxu0 0.0
    %v1805 = vand.u32 %v184, 4294901760
    %1806 = vmatpush1.msra.mxu0 %v1805
    %1807 = vmatprep.subr.mxu0 0.0
    %v1808 = vand.u32 %v181, 4294901760
    %1809 = vmatpush1.msra.mxu0 %v1808
    %1810 = vmatprep.subr.mxu0 0.0
    %v1811 = vand.u32 %v178, 4294901760
    %1812 = vmatpush1.msra.mxu0 %v1811
    %1813 = vmatprep.subr.mxu0 0.0
    %v1814 = vand.u32 %v175, 4294901760
    %1815 = vmatpush1.msra.mxu0 %v1814
    %1816 = vmatprep.subr.mxu0 0.0
    %v1817 = vand.u32 %v172, 4294901760
    %1818 = vmatpush1.msra.mxu0 %v1817
    %1819 = vmatprep.subr.mxu0 0.0
    %v1820 = vand.u32 %v169, 4294901760
    %1821 = vmatpush1.msra.mxu0 %v1820
    %1822 = vmatprep.subr.mxu0 0.0
    %1823 = vmatpush2.msra.mxu0 0.0
    %1824 = vmatprep.subr.mxu0 0.0
    %1825 = vmatpush2.msra.mxu0 0.0
    %1826 = vmatprep.subr.mxu0 0.0
    %1827 = vmatpush2.msra.mxu0 0.0
    %1828 = vmatprep.subr.mxu0 0.0
    %1829 = vmatpush2.msra.mxu0 0.0
    %1830 = vmatprep.subr.mxu0 0.0
    %1831 = vmatpush2.msra.mxu0 0.0
    %1832 = vmatprep.subr.mxu0 0.0
    %1833 = vmatpush2.msra.mxu0 0.0
    %1834 = vmatprep.subr.mxu0 0.0
    %1835 = vmatpush2.msra.mxu0 0.0
    %1836 = vmatprep.subr.mxu0 0.0
    %v1837 = vand.u32 %v241, 4294901760
    %1838 = vmatpush2.msra.mxu0 %v1837
    %1839 = vmatprep.subr.mxu0 0.0
    %v1840 = vand.u32 %v238, 4294901760
    %1841 = vmatpush2.msra.mxu0 %v1840
    %1842 = vmatprep.subr.mxu0 0.0
    %v1843 = vand.u32 %v235, 4294901760
    %1844 = vmatpush2.msra.mxu0 %v1843
    %1845 = vmatprep.subr.mxu0 0.0
    %v1846 = vand.u32 %v232, 4294901760
    %1847 = vmatpush2.msra.mxu0 %v1846
    %1848 = vmatprep.subr.mxu0 0.0
    %v1849 = vand.u32 %v229, 4294901760
    %1850 = vmatpush2.msra.mxu0 %v1849
    %1851 = vmatprep.subr.mxu0 0.0
    %v1852 = vand.u32 %v226, 4294901760
    %1853 = vmatpush2.msra.mxu0 %v1852
    %1854 = vmatprep.subr.mxu0 0.0
    %v1855 = vand.u32 %v223, 4294901760
    %1856 = vmatpush2.msra.mxu0 %v1855
    %1857 = vmatprep.subr.mxu0 0.0
    %v1858 = vand.u32 %v220, 4294901760
    %1859 = vmatpush2.msra.mxu0 %v1858
    %1860 = vmatprep.subr.mxu0 0.0
    %v1861 = vand.u32 %v217, 4294901760
    %1862 = vmatpush2.msra.mxu0 %v1861
    %v1863 = vand.u32 %v244, 4294901760
    %v1864 = vsub.f32 %v244, %v1863
    %v1865 = vand.u32 %v1864, 4294901760
    %1866 = vmatprep.mubr.f32.mxu0 %v1865
    %v1867 = vand.u32 %v165, 4294901760
    %v1868 = vsub.f32 %v165, %v1867
    %v1869 = vand.u32 %v1868, 4294901760
    %1870 = vmatmul.mubr.f32.gmra.mxu0 %v1869
    %v1871 = vpop.f32.mrf.mxu0
    %v1872 = vadd.f32 %v1771, %v1871
    %v1873 = vpop.f32.mrf.mxu0
    %1874 = vdwg.mxu0
    %1875 = vmatprep.subr.mxu0 0.0
    %v1876 = vand.u32 %v214, 4294901760
    %v1877 = vsub.f32 %v214, %v1876
    %v1878 = vand.u32 %v1877, 4294901760
    %1879 = vmatpush1.msra.mxu0 %v1878
    %1880 = vmatprep.subr.mxu0 0.0
    %v1881 = vand.u32 %v211, 4294901760
    %v1882 = vsub.f32 %v211, %v1881
    %v1883 = vand.u32 %v1882, 4294901760
    %1884 = vmatpush1.msra.mxu0 %v1883
    %1885 = vmatprep.subr.mxu0 0.0
    %v1886 = vand.u32 %v208, 4294901760
    %v1887 = vsub.f32 %v208, %v1886
    %v1888 = vand.u32 %v1887, 4294901760
    %1889 = vmatpush1.msra.mxu0 %v1888
    %1890 = vmatprep.subr.mxu0 0.0
    %v1891 = vand.u32 %v205, 4294901760
    %v1892 = vsub.f32 %v205, %v1891
    %v1893 = vand.u32 %v1892, 4294901760
    %1894 = vmatpush1.msra.mxu0 %v1893
    %1895 = vmatprep.subr.mxu0 0.0
    %v1896 = vand.u32 %v202, 4294901760
    %v1897 = vsub.f32 %v202, %v1896
    %v1898 = vand.u32 %v1897, 4294901760
    %1899 = vmatpush1.msra.mxu0 %v1898
    %1900 = vmatprep.subr.mxu0 0.0
    %v1901 = vand.u32 %v199, 4294901760
    %v1902 = vsub.f32 %v199, %v1901
    %v1903 = vand.u32 %v1902, 4294901760
    %1904 = vmatpush1.msra.mxu0 %v1903
    %1905 = vmatprep.subr.mxu0 0.0
    %v1906 = vand.u32 %v196, 4294901760
    %v1907 = vsub.f32 %v196, %v1906
    %v1908 = vand.u32 %v1907, 4294901760
    %1909 = vmatpush1.msra.mxu0 %v1908
    %1910 = vmatprep.subr.mxu0 0.0
    %v1911 = vand.u32 %v193, 4294901760
    %v1912 = vsub.f32 %v193, %v1911
    %v1913 = vand.u32 %v1912, 4294901760
    %1914 = vmatpush1.msra.mxu0 %v1913
    %1915 = vmatprep.subr.mxu0 0.0
    %v1916 = vand.u32 %v190, 4294901760
    %v1917 = vsub.f32 %v190, %v1916
    %v1918 = vand.u32 %v1917, 4294901760
    %1919 = vmatpush1.msra.mxu0 %v1918
    %1920 = vmatprep.subr.mxu0 0.0
    %v1921 = vand.u32 %v187, 4294901760
    %v1922 = vsub.f32 %v187, %v1921
    %v1923 = vand.u32 %v1922, 4294901760
    %1924 = vmatpush1.msra.mxu0 %v1923
    %1925 = vmatprep.subr.mxu0 0.0
    %v1926 = vand.u32 %v184, 4294901760
    %v1927 = vsub.f32 %v184, %v1926
    %v1928 = vand.u32 %v1927, 4294901760
    %1929 = vmatpush1.msra.mxu0 %v1928
    %1930 = vmatprep.subr.mxu0 0.0
    %v1931 = vand.u32 %v181, 4294901760
    %v1932 = vsub.f32 %v181, %v1931
    %v1933 = vand.u32 %v1932, 4294901760
    %1934 = vmatpush1.msra.mxu0 %v1933
    %1935 = vmatprep.subr.mxu0 0.0
    %v1936 = vand.u32 %v178, 4294901760
    %v1937 = vsub.f32 %v178, %v1936
    %v1938 = vand.u32 %v1937, 4294901760
    %1939 = vmatpush1.msra.mxu0 %v1938
    %1940 = vmatprep.subr.mxu0 0.0
    %v1941 = vand.u32 %v175, 4294901760
    %v1942 = vsub.f32 %v175, %v1941
    %v1943 = vand.u32 %v1942, 4294901760
    %1944 = vmatpush1.msra.mxu0 %v1943
    %1945 = vmatprep.subr.mxu0 0.0
    %v1946 = vand.u32 %v172, 4294901760
    %v1947 = vsub.f32 %v172, %v1946
    %v1948 = vand.u32 %v1947, 4294901760
    %1949 = vmatpush1.msra.mxu0 %v1948
    %1950 = vmatprep.subr.mxu0 0.0
    %v1951 = vand.u32 %v169, 4294901760
    %v1952 = vsub.f32 %v169, %v1951
    %v1953 = vand.u32 %v1952, 4294901760
    %1954 = vmatpush1.msra.mxu0 %v1953
    %1955 = vmatprep.subr.mxu0 0.0
    %1956 = vmatpush2.msra.mxu0 0.0
    %1957 = vmatprep.subr.mxu0 0.0
    %1958 = vmatpush2.msra.mxu0 0.0
    %1959 = vmatprep.subr.mxu0 0.0
    %1960 = vmatpush2.msra.mxu0 0.0
    %1961 = vmatprep.subr.mxu0 0.0
    %1962 = vmatpush2.msra.mxu0 0.0
    %1963 = vmatprep.subr.mxu0 0.0
    %1964 = vmatpush2.msra.mxu0 0.0
    %1965 = vmatprep.subr.mxu0 0.0
    %1966 = vmatpush2.msra.mxu0 0.0
    %1967 = vmatprep.subr.mxu0 0.0
    %1968 = vmatpush2.msra.mxu0 0.0
    %1969 = vmatprep.subr.mxu0 0.0
    %v1970 = vand.u32 %v241, 4294901760
    %v1971 = vsub.f32 %v241, %v1970
    %v1972 = vand.u32 %v1971, 4294901760
    %1973 = vmatpush2.msra.mxu0 %v1972
    %1974 = vmatprep.subr.mxu0 0.0
    %v1975 = vand.u32 %v238, 4294901760
    %v1976 = vsub.f32 %v238, %v1975
    %v1977 = vand.u32 %v1976, 4294901760
    %1978 = vmatpush2.msra.mxu0 %v1977
    %1979 = vmatprep.subr.mxu0 0.0
    %v1980 = vand.u32 %v235, 4294901760
    %v1981 = vsub.f32 %v235, %v1980
    %v1982 = vand.u32 %v1981, 4294901760
    %1983 = vmatpush2.msra.mxu0 %v1982
    %1984 = vmatprep.subr.mxu0 0.0
    %v1985 = vand.u32 %v232, 4294901760
    %v1986 = vsub.f32 %v232, %v1985
    %v1987 = vand.u32 %v1986, 4294901760
    %1988 = vmatpush2.msra.mxu0 %v1987
    %1989 = vmatprep.subr.mxu0 0.0
    %v1990 = vand.u32 %v229, 4294901760
    %v1991 = vsub.f32 %v229, %v1990
    %v1992 = vand.u32 %v1991, 4294901760
    %1993 = vmatpush2.msra.mxu0 %v1992
    %1994 = vmatprep.subr.mxu0 0.0
    %v1995 = vand.u32 %v226, 4294901760
    %v1996 = vsub.f32 %v226, %v1995
    %v1997 = vand.u32 %v1996, 4294901760
    %1998 = vmatpush2.msra.mxu0 %v1997
    %1999 = vmatprep.subr.mxu0 0.0
    %v2000 = vand.u32 %v223, 4294901760
    %v2001 = vsub.f32 %v223, %v2000
    %v2002 = vand.u32 %v2001, 4294901760
    %2003 = vmatpush2.msra.mxu0 %v2002
    %2004 = vmatprep.subr.mxu0 0.0
    %v2005 = vand.u32 %v220, 4294901760
    %v2006 = vsub.f32 %v220, %v2005
    %v2007 = vand.u32 %v2006, 4294901760
    %2008 = vmatpush2.msra.mxu0 %v2007
    %2009 = vmatprep.subr.mxu0 0.0
    %v2010 = vand.u32 %v217, 4294901760
    %v2011 = vsub.f32 %v217, %v2010
    %v2012 = vand.u32 %v2011, 4294901760
    %2013 = vmatpush2.msra.mxu0 %v2012
    %v2014 = vand.u32 %v244, 4294901760
    %2015 = vmatprep.mubr.f32.mxu0 %v2014
    %v2016 = vand.u32 %v165, 4294901760
    %2017 = vmatmul.mubr.f32.gmra.mxu0 %v2016
    %v2018 = vpop.f32.mrf.mxu0
    %v2019 = vadd.f32 %v1872, %v2018
    %v2020 = vpop.f32.mrf.mxu0
    %2021 = vdwg.mxu0
    %2022 = vmatprep.subr.mxu0 0.0
    %v2023 = vand.u32 %v214, 4294901760
    %2024 = vmatpush1.msra.mxu0 %v2023
    %2025 = vmatprep.subr.mxu0 0.0
    %v2026 = vand.u32 %v211, 4294901760
    %2027 = vmatpush1.msra.mxu0 %v2026
    %2028 = vmatprep.subr.mxu0 0.0
    %v2029 = vand.u32 %v208, 4294901760
    %2030 = vmatpush1.msra.mxu0 %v2029
    %2031 = vmatprep.subr.mxu0 0.0
    %v2032 = vand.u32 %v205, 4294901760
    %2033 = vmatpush1.msra.mxu0 %v2032
    %2034 = vmatprep.subr.mxu0 0.0
    %v2035 = vand.u32 %v202, 4294901760
    %2036 = vmatpush1.msra.mxu0 %v2035
    %2037 = vmatprep.subr.mxu0 0.0
    %v2038 = vand.u32 %v199, 4294901760
    %2039 = vmatpush1.msra.mxu0 %v2038
    %2040 = vmatprep.subr.mxu0 0.0
    %v2041 = vand.u32 %v196, 4294901760
    %2042 = vmatpush1.msra.mxu0 %v2041
    %2043 = vmatprep.subr.mxu0 0.0
    %v2044 = vand.u32 %v193, 4294901760
    %2045 = vmatpush1.msra.mxu0 %v2044
    %2046 = vmatprep.subr.mxu0 0.0
    %v2047 = vand.u32 %v190, 4294901760
    %2048 = vmatpush1.msra.mxu0 %v2047
    %2049 = vmatprep.subr.mxu0 0.0
    %v2050 = vand.u32 %v187, 4294901760
    %2051 = vmatpush1.msra.mxu0 %v2050
    %2052 = vmatprep.subr.mxu0 0.0
    %v2053 = vand.u32 %v184, 4294901760
    %2054 = vmatpush1.msra.mxu0 %v2053
    %2055 = vmatprep.subr.mxu0 0.0
    %v2056 = vand.u32 %v181, 4294901760
    %2057 = vmatpush1.msra.mxu0 %v2056
    %2058 = vmatprep.subr.mxu0 0.0
    %v2059 = vand.u32 %v178, 4294901760
    %2060 = vmatpush1.msra.mxu0 %v2059
    %2061 = vmatprep.subr.mxu0 0.0
    %v2062 = vand.u32 %v175, 4294901760
    %2063 = vmatpush1.msra.mxu0 %v2062
    %2064 = vmatprep.subr.mxu0 0.0
    %v2065 = vand.u32 %v172, 4294901760
    %2066 = vmatpush1.msra.mxu0 %v2065
    %2067 = vmatprep.subr.mxu0 0.0
    %v2068 = vand.u32 %v169, 4294901760
    %2069 = vmatpush1.msra.mxu0 %v2068
    %2070 = vmatprep.subr.mxu0 0.0
    %2071 = vmatpush2.msra.mxu0 0.0
    %2072 = vmatprep.subr.mxu0 0.0
    %2073 = vmatpush2.msra.mxu0 0.0
    %2074 = vmatprep.subr.mxu0 0.0
    %2075 = vmatpush2.msra.mxu0 0.0
    %2076 = vmatprep.subr.mxu0 0.0
    %2077 = vmatpush2.msra.mxu0 0.0
    %2078 = vmatprep.subr.mxu0 0.0
    %2079 = vmatpush2.msra.mxu0 0.0
    %2080 = vmatprep.subr.mxu0 0.0
    %2081 = vmatpush2.msra.mxu0 0.0
    %2082 = vmatprep.subr.mxu0 0.0
    %2083 = vmatpush2.msra.mxu0 0.0
    %2084 = vmatprep.subr.mxu0 0.0
    %v2085 = vand.u32 %v241, 4294901760
    %2086 = vmatpush2.msra.mxu0 %v2085
    %2087 = vmatprep.subr.mxu0 0.0
    %v2088 = vand.u32 %v238, 4294901760
    %2089 = vmatpush2.msra.mxu0 %v2088
    %2090 = vmatprep.subr.mxu0 0.0
    %v2091 = vand.u32 %v235, 4294901760
    %2092 = vmatpush2.msra.mxu0 %v2091
    %2093 = vmatprep.subr.mxu0 0.0
    %v2094 = vand.u32 %v232, 4294901760
    %2095 = vmatpush2.msra.mxu0 %v2094
    %2096 = vmatprep.subr.mxu0 0.0
    %v2097 = vand.u32 %v229, 4294901760
    %2098 = vmatpush2.msra.mxu0 %v2097
    %2099 = vmatprep.subr.mxu0 0.0
    %v2100 = vand.u32 %v226, 4294901760
    %2101 = vmatpush2.msra.mxu0 %v2100
    %2102 = vmatprep.subr.mxu0 0.0
    %v2103 = vand.u32 %v223, 4294901760
    %2104 = vmatpush2.msra.mxu0 %v2103
    %2105 = vmatprep.subr.mxu0 0.0
    %v2106 = vand.u32 %v220, 4294901760
    %2107 = vmatpush2.msra.mxu0 %v2106
    %2108 = vmatprep.subr.mxu0 0.0
    %v2109 = vand.u32 %v217, 4294901760
    %2110 = vmatpush2.msra.mxu0 %v2109
    %v2111 = vand.u32 %v244, 4294901760
    %2112 = vmatprep.mubr.f32.mxu0 %v2111
    %v2113 = vand.u32 %v165, 4294901760
    %2114 = vmatmul.mubr.f32.gmra.mxu0 %v2113
    %v2115 = vpop.f32.mrf.mxu0
    %v2116 = vadd.f32 %v2019, %v2115
    %v2117 = vpop.f32.mrf.mxu0
    %2118 = vdwg.mxu0
    %2119 = vst [vmem:[#allocation5] sm:$0xff] %v1344
    %2120 = vst [vmem:[#allocation5 + $0x8] sm:$0xff] %v1346
    %vm2121 = vcmask 523264
    %2122 = vst.msk [vmem:[#allocation5 + $0x10] sm:$0xff] %vm2121, %v2116
    // Predicated region
    $region22: #{tpu_custom_call.1} parent=1 // pred_check
      _
    $region23: #{tpu_custom_call.1} parent=1 // pred_check_branch
      %2124 = sbr.rel (0) target = $region25
    $region24: #{tpu_custom_call.1} parent=1 // pred_region
      %s2126 = ssub.s32 384, 384
      %2127 = vsyncadd [#allocation4], %s2126
      %s2129 = sshll.u32 [#allocation5], 4
      %s2130 = int_to_ptr.vmem [resolvable:$true] %s2129
      %2132 = dma.vmem_to_hbm [thread:$0]  %s2130, 384, %s4, [#allocation4]
    $region25: #{tpu_custom_call.1} parent=1 // pred_fallthru
      _
    // Predicated region
    $region26: #{tpu_custom_call.1} parent=1 // pred_check
      _
    $region27: #{tpu_custom_call.1} parent=1 // pred_check_branch
      %2134 = sbr.rel (0) target = $region29
    $region28: #{tpu_custom_call.1} parent=1 // pred_region
      %2135 = dma.done [#allocation4], 384
    $region29: #{tpu_custom_call.1} parent=1 // pred_fallthru
      _
    %2136 = vsyncpa [#allocation3], 1
    %2137 = vsyncpa [#allocation4], 1

</llo_original>
